<compile_context>
chip_gen: v7x
topology: tpu7x:2x2x1
jax: 0.10.0
libtpu: 0.0.40
codegen_flags: <defaults>
</compile_context>

<pallas_src>
import jax
import jax.numpy as jnp
from jax.experimental import pallas as pl
from jax.experimental.pallas import tpu as pltpu

# ----------------------------- problem sizes -----------------------------
B = 2                    # batch of graphs
N = 8                    # max_nodes (forced by the hard coded 14 = 8 + 6 split)
E = 6                    # num_edge_types
H = 32                   # encoder hidden width
D = 16                   # latent dim
H2 = 32                  # decoder hidden width
M = N + E                # 14 : per-node feature width of m_true / m_hat
NM = N * M               # 112: flattened m_true width
W2 = 2 * H               # 64 : lane width of the packed "w_in" weight buffer
DEC_OUT = (N - 1) * M    # 98 : decoder emits (N-1) rows of width M


# ------------------------------ kernel body -------------------------------
def _invae_kernel(m_ref, eps_ref, w_in_ref, w_d2_ref, bias_ref,
                  adj_ref, vert_ref, stats_ref):
    """Fused encoder + reparametrization + decoder + post-processing.

    w_in_ref packs (row sections, 8-row aligned, 64 lanes wide):
        rows [  0:112] : [ w1_fold | wdm ]   (mean-pool fold | decoder m-branch)
        rows [112:144] : [ wmu||wls | 0  ]   fused mu/log_sigma head (cols 0:32)
        rows [144:160] : [  wdz     | 0  ]   decoder z-branch         (cols 0:32)
    w_d2_ref is the decoder head with the fixed-row append + node-axis flip
    pre-baked as a column permutation, so row n of its output IS final row n.
    """
    m_flat = m_ref[...]                                       # (B, 112)

    # ---- single MXU pass over m_true: encoder L1 pre-act | decoder m-branch
    enc_dec = jnp.dot(m_flat, w_in_ref[0:NM, :],
                      preferred_element_type=jnp.float32)     # (B, 64)

    # ---- encoder (graph mean-pool folded into columns 0:H) ----
    h = jnp.maximum(enc_dec[:, 0:H] + bias_ref[0:1, 0:H], 0.0)        # (B, H)

    mu_ls = jnp.dot(h, w_in_ref[NM:NM + H, 0:2 * D],
                    preferred_element_type=jnp.float32) + bias_ref[1:2, 0:2 * D]
    mu = mu_ls[:, 0:D]                                        # (B, D)
    log_sigma = mu_ls[:, D:2 * D]                             # (B, D)

    # TODO(synk): ReparametrizationTrick class is not provided; use the
    # standard diagonal trick  z = mu + exp(log_sigma) * eps,  L_diag = exp(log_sigma).
    l_diag = jnp.exp(log_sigma)
    z = mu + l_diag * eps_ref[...]                            # (B, D)

    # packed stats output: [mu | log_sigma | L_diag]
    stats_ref[:, 0:2 * D] = mu_ls
    stats_ref[:, 2 * D:3 * D] = l_diag

    # ---- decoder layer 1: tiny z-branch matmul + precomputed m-branch ----
    hd = jnp.maximum(
        jnp.dot(z, w_in_ref[NM + H:NM + H + D, 0:H2],
                preferred_element_type=jnp.float32)
        + enc_dec[:, H:H + H2] + bias_ref[2:3, 0:H2],
        0.0)                                                  # (B, H2)

    # ---- decoder head (append + flip baked into the column permutation) ----
    dec = jnp.dot(hd, w_d2_ref[...],
                  preferred_element_type=jnp.float32) + bias_ref[3:4, 0:DEC_OUT]

    # ---- post-processing, written row-by-row (no in-kernel reshape) ----
    col_n = jax.lax.broadcasted_iota(jnp.int32, (B, N), 1)    # (B, 8) lane index
    for n in range(N - 1):                                    # final node rows 0..6
        adj_raw = dec[:, n * M:n * M + N]                     # (B, 8)
        vert_raw = dec[:, n * M + N:(n + 1) * M]              # (B, 6)
        # sigmoid * strictly-upper-triangular row mask (col > row)
        adj_ref[:, n, :] = jnp.where(col_n > n, jax.nn.sigmoid(adj_raw), 0.0)
        # softmax over edge types
        ex = jnp.exp(vert_raw - jnp.max(vert_raw, axis=-1, keepdims=True))
        vert_ref[:, n, :] = ex / jnp.sum(ex, axis=-1, keepdims=True)

    # last node row: strict-upper-tri row N-1 is all zero; vertex[:, -1] = e_last
    col_e = jax.lax.broadcasted_iota(jnp.int32, (B, E), 1)
    adj_ref[:, N - 1, :] = jnp.zeros((B, N), jnp.float32)
    vert_ref[:, N - 1, :] = (col_e == (E - 1)).astype(jnp.float32)


# --------------------------- pallas_call wrapper ---------------------------
_VMEM = pl.BlockSpec(memory_space=pltpu.MemorySpace.VMEM)


def _invae_call(m_flat, eps, w_in, w_d2, biases):
    return pl.pallas_call(
        _invae_kernel,
        out_shape=(
            jax.ShapeDtypeStruct((B, N, N), jnp.float32),     # adj_matrices
            jax.ShapeDtypeStruct((B, N, E), jnp.float32),     # vertex
            jax.ShapeDtypeStruct((B, 3 * D), jnp.float32),    # [mu|log_sigma|L_diag]
        ),
        in_specs=[_VMEM] * 5,
        out_specs=(_VMEM, _VMEM, _VMEM),
    )(m_flat, eps, w_in, w_d2, biases)


# ------------------------------ glue (JAX) --------------------------------
def to_dense_batch(edge_index, edge_weight, batch_size, max_nodes):
    """Dense (B, N, N) adjacency from a batched edge list (data-dependent scatter)."""
    src, dst = edge_index[0], edge_index[1]
    b = src // max_nodes
    r = src % max_nodes
    c = dst % max_nodes
    adj = jnp.zeros((batch_size, max_nodes, max_nodes), jnp.float32)
    return adj.at[b, r, c].set(edge_weight)


def init_raw_params(key):
    ks = jax.random.split(key, 11)
    s, sb = 0.1, 0.05
    w1 = s * jax.random.normal(ks[0], (E, H), jnp.float32)
    b1 = sb * jax.random.normal(ks[1], (1, H), jnp.float32)
    wmu = s * jax.random.normal(ks[2], (H, D), jnp.float32)
    bmu = sb * jax.random.normal(ks[3], (1, D), jnp.float32)
    wls = s * jax.random.normal(ks[4], (H, D), jnp.float32)
    bls = sb * jax.random.normal(ks[5], (1, D), jnp.float32)
    wdz = s * jax.random.normal(ks[6], (D, H2), jnp.float32)
    wdm = s * jax.random.normal(ks[7], (NM, H2), jnp.float32)
    bd1 = sb * jax.random.normal(ks[8], (1, H2), jnp.float32)
    wd2 = s * jax.random.normal(ks[9], (H2, DEC_OUT), jnp.float32)
    bd2 = sb * jax.random.normal(ks[10], (1, DEC_OUT), jnp.float32)
    return (w1, b1, wmu, bmu, wls, bls, wdz, wdm, bd1, wd2, bd2)


def pack_params(raw):
    """One-time host-side packing of the 11 raw tensors into 3 VMEM operands."""
    (w1, b1, wmu, bmu, wls, bls, wdz, wdm, bd1, wd2, bd2) = raw

    # (a) fold graph mean-pool over the x block of m_true into the first weight:
    #     mean_i(x[b, i, :]) @ w1  ==  m_flat @ w1_fold
    w1_fold = jnp.zeros((NM, H), jnp.float32)
    for i in range(N):
        w1_fold = w1_fold.at[i * M + N:(i + 1) * M, :].set(w1 / N)

    # (b) put the decoder m-branch weight next to it in the lane dimension so
    #     encoder L1 and decoder L1's m-contribution come from ONE matmul
    blk0 = jnp.concatenate([w1_fold, wdm], axis=1)            # (112, 64)

    # (c) fuse mu / log_sigma heads into one (H, 2D) weight (cols 0:32)
    blk1 = jnp.zeros((H, W2), jnp.float32).at[:, 0:2 * D].set(
        jnp.concatenate([wmu, wls], axis=1))                  # (32, 64)

    # (d) decoder z-branch weight (cols 0:32)
    blk2 = jnp.zeros((D, W2), jnp.float32).at[:, 0:H2].set(wdz)  # (16, 64)

    w_in = jnp.concatenate([blk0, blk1, blk2], axis=0)        # (160, 64)

    # (e) bake "append one-hot row + flip along node axis" into a column
    #     permutation of the decoder head: final node row n = decoder row N-2-n
    perm = jnp.array([(N - 2 - n) * M + f
                      for n in range(N - 1) for f in range(M)], jnp.int32)
    w_d2 = wd2[:, perm]                                       # (H2, 98)
    b_d2 = bd2[:, perm]                                       # (1, 98)

    # (f) all biases into one lane-dense (8, 128) buffer
    biases = jnp.zeros((8, 128), jnp.float32)
    biases = biases.at[0, :H].set(b1[0])
    biases = biases.at[1, :2 * D].set(jnp.concatenate([bmu, bls], axis=1)[0])
    biases = biases.at[2, :H2].set(bd1[0])
    biases = biases.at[3, :DEC_OUT].set(b_d2[0])
    return (w_in, w_d2, biases)


@jax.jit
def invae_forward(packed, x, edge_index, batch, edge_weight, eps):
    del batch  # synthetic encoder mean-pools over the fixed max_nodes axis
    w_in, w_d2, biases = packed
    x3d = x.reshape(B, N, E)                                   # x.view(-1, N, E)
    adj = to_dense_batch(edge_index, edge_weight, B, N)        # (B, N, N)
    m_flat = jnp.concatenate([adj, x3d], axis=-1).reshape(B, NM)

    adj_matrices, vertex, stats = _invae_call(m_flat, eps, w_in, w_d2, biases)

    mu = stats[:, 0:D]
    log_sigma = stats[:, D:2 * D]
    l_diag = stats[:, 2 * D:3 * D]
    return adj_matrices, vertex, l_diag, mu, log_sigma


# ------------------------- pure-JAX reference check ------------------------
def reference_forward(raw, x, edge_index, batch, edge_weight, eps):
    (w1, b1, wmu, bmu, wls, bls, wdz, wdm, bd1, wd2, bd2) = raw
    del batch
    x3d = x.reshape(B, N, E)
    adj = to_dense_batch(edge_index, edge_weight, B, N)
    m_true = jnp.concatenate([adj, x3d], axis=-1)              # (B, N, 14)
    m_flat = m_true.reshape(B, NM)
    pooled = jnp.mean(x3d, axis=1)
    h = jnp.maximum(pooled @ w1 + b1, 0.0)
    mu = h @ wmu + bmu
    log_sigma = h @ wls + bls
    l_diag = jnp.exp(log_sigma)
    z = mu + l_diag * eps
    hd = jnp.maximum(z @ wdz + m_flat @ wdm + bd1, 0.0)
    m_hat = (hd @ wd2 + bd2).reshape(B, N - 1, M)
    row = jnp.zeros((B, 1, M), jnp.float32).at[:, :, -1].set(1.0)
    m_hat = jnp.flip(jnp.concatenate([row, m_hat], axis=1), axis=1)
    adj_raw, vert_raw = m_hat[..., :N], m_hat[..., N:]
    adj_m = jax.nn.sigmoid(adj_raw) * jnp.triu(jnp.ones((N, N), jnp.float32), k=1)
    vert = jax.nn.softmax(vert_raw, axis=-1)
    vert = vert.at[:, -1, :].set(jnp.zeros((E,), jnp.float32).at[-1].set(1.0))
    return adj_m, vert, l_diag, mu, log_sigma


# --------------------------------- main ------------------------------------
if __name__ == "__main__":
    key = jax.random.PRNGKey(0)
    kx, keps, kw = jax.random.split(key, 3)

    # node features: (B * max_nodes, num_edge_types) as in the PyTorch module
    x = jax.random.normal(kx, (B * N, E), jnp.float32)

    # simple chain graph per batch element
    srcs, dsts = [], []
    for b in range(B):
        for i in range(N - 1):
            srcs.append(b * N + i)
            dsts.append(b * N + i + 1)
    edge_index = jnp.array([srcs, dsts], dtype=jnp.int32)       # (2, 14)
    edge_weight = jnp.ones((edge_index.shape[1],), jnp.float32)
    batch = jnp.repeat(jnp.arange(B, dtype=jnp.int32), N)       # (16,)

    eps = jax.random.normal(keps, (B, D), jnp.float32)
    raw = init_raw_params(kw)
    packed = pack_params(raw)

    outs = invae_forward(packed, x, edge_index, batch, edge_weight, eps)
    jax.block_until_ready(outs)
    adj_matrices, vertex, l_diag, mu, log_sigma = outs

    assert adj_matrices.shape == (B, N, N)
    assert vertex.shape == (B, N, E)
    assert mu.shape == (B, D) and log_sigma.shape == (B, D) and l_diag.shape == (B, D)

    # verify the fused / permuted-weight kernel against the pure-JAX reference
    refs = reference_forward(raw, x, edge_index, batch, edge_weight, eps)
    for got, want in zip(outs, refs):
        assert jnp.allclose(got, want, rtol=1e-4, atol=1e-4)

    print("KERNEL_OK")
</pallas_src>

<mosaic_0001>
module attributes {stable_mosaic.version = 11 : i64} {
  func.func @_invae_kernel(%arg0: memref<2x112xf32, #tpu.memory_space<vmem>>, %arg1: memref<2x16xf32, #tpu.memory_space<vmem>>, %arg2: memref<160x64xf32, #tpu.memory_space<vmem>>, %arg3: memref<32x98xf32, #tpu.memory_space<vmem>>, %arg4: memref<8x128xf32, #tpu.memory_space<vmem>>, %arg5: memref<2x8x8xf32, #tpu.memory_space<vmem>>, %arg6: memref<2x8x6xf32, #tpu.memory_space<vmem>>, %arg7: memref<2x48xf32, #tpu.memory_space<vmem>>) attributes {dimension_semantics = [], scalar_prefetch = 0 : i64, scratch_operands = 0 : i64, tpu.core_type = #tpu.core_type<tc>} {
    %c0 = arith.constant 0 : index
    %c0_0 = arith.constant 0 : index
    %0 = vector.load %arg0[%c0, %c0_0] : memref<2x112xf32, #tpu.memory_space<vmem>>, vector<2x112xf32>
    %c0_1 = arith.constant 0 : index
    %c0_2 = arith.constant 0 : index
    %1 = vector.load %arg2[%c0_1, %c0_2] : memref<160x64xf32, #tpu.memory_space<vmem>>, vector<112x64xf32>
    %cst = arith.constant dense<0.000000e+00> : vector<2x64xf32>
    %2 = tpu.matmul %0, %1, %cst {dimension_numbers = #tpu.dot_dimension_numbers<[1], [0], [0], [1], [0, 0, 1, 1], [], []>} : vector<2x112xf32>, vector<112x64xf32>, vector<2x64xf32> -> vector<2x64xf32>
    %3 = vector.extract_strided_slice %2 {offsets = [0, 0], sizes = [2, 32], strides = [1, 1]} : vector<2x64xf32> to vector<2x32xf32>
    %c0_3 = arith.constant 0 : index
    %c0_4 = arith.constant 0 : index
    %4 = vector.load %arg4[%c0_3, %c0_4] : memref<8x128xf32, #tpu.memory_space<vmem>>, vector<1x32xf32>
    %5 = vector.broadcast %4 : vector<1x32xf32> to vector<2x32xf32>
    %6 = arith.addf %3, %5 : vector<2x32xf32>
    %cst_5 = arith.constant 0.000000e+00 : f32
    %7 = vector.broadcast %cst_5 : f32 to vector<2x32xf32>
    %8 = arith.maximumf %6, %7 : vector<2x32xf32>
    %c112 = arith.constant 112 : index
    %c0_6 = arith.constant 0 : index
    %9 = vector.load %arg2[%c112, %c0_6] : memref<160x64xf32, #tpu.memory_space<vmem>>, vector<32x32xf32>
    %cst_7 = arith.constant dense<0.000000e+00> : vector<2x32xf32>
    %10 = tpu.matmul %8, %9, %cst_7 {dimension_numbers = #tpu.dot_dimension_numbers<[1], [0], [0], [1], [0, 0, 1, 1], [], []>} : vector<2x32xf32>, vector<32x32xf32>, vector<2x32xf32> -> vector<2x32xf32>
    %c1 = arith.constant 1 : index
    %c0_8 = arith.constant 0 : index
    %11 = vector.load %arg4[%c1, %c0_8] : memref<8x128xf32, #tpu.memory_space<vmem>>, vector<1x32xf32>
    %12 = vector.broadcast %11 : vector<1x32xf32> to vector<2x32xf32>
    %13 = arith.addf %10, %12 : vector<2x32xf32>
    %14 = vector.extract_strided_slice %13 {offsets = [0, 0], sizes = [2, 16], strides = [1, 1]} : vector<2x32xf32> to vector<2x16xf32>
    %15 = vector.extract_strided_slice %13 {offsets = [0, 16], sizes = [2, 16], strides = [1, 1]} : vector<2x32xf32> to vector<2x16xf32>
    %16 = math.exp %15 : vector<2x16xf32>
    %c0_9 = arith.constant 0 : index
    %c0_10 = arith.constant 0 : index
    %17 = vector.load %arg1[%c0_9, %c0_10] : memref<2x16xf32, #tpu.memory_space<vmem>>, vector<2x16xf32>
    %18 = arith.mulf %16, %17 : vector<2x16xf32>
    %19 = arith.addf %14, %18 : vector<2x16xf32>
    %c0_11 = arith.constant 0 : index
    %c0_12 = arith.constant 0 : index
    %20 = vector.load %arg7[%c0_11, %c0_12] : memref<2x48xf32, #tpu.memory_space<vmem>>, vector<2x32xf32>
    tpu.vector_store %arg7[%c0_11, %c0_12], %13 {strides = array<i32>} : memref<2x48xf32, #tpu.memory_space<vmem>>, vector<2x32xf32>,
    %c0_13 = arith.constant 0 : index
    %c32 = arith.constant 32 : index
    %21 = vector.load %arg7[%c0_13, %c32] : memref<2x48xf32, #tpu.memory_space<vmem>>, vector<2x16xf32>
    tpu.vector_store %arg7[%c0_13, %c32], %16 {strides = array<i32>} : memref<2x48xf32, #tpu.memory_space<vmem>>, vector<2x16xf32>,
    %c144 = arith.constant 144 : index
    %c0_14 = arith.constant 0 : index
    %22 = vector.load %arg2[%c144, %c0_14] : memref<160x64xf32, #tpu.memory_space<vmem>>, vector<16x32xf32>
    %cst_15 = arith.constant dense<0.000000e+00> : vector<2x32xf32>
    %23 = tpu.matmul %19, %22, %cst_15 {dimension_numbers = #tpu.dot_dimension_numbers<[1], [0], [0], [1], [0, 0, 1, 1], [], []>} : vector<2x16xf32>, vector<16x32xf32>, vector<2x32xf32> -> vector<2x32xf32>
    %24 = vector.extract_strided_slice %2 {offsets = [0, 32], sizes = [2, 32], strides = [1, 1]} : vector<2x64xf32> to vector<2x32xf32>
    %25 = arith.addf %23, %24 : vector<2x32xf32>
    %c2 = arith.constant 2 : index
    %c0_16 = arith.constant 0 : index
    %26 = vector.load %arg4[%c2, %c0_16] : memref<8x128xf32, #tpu.memory_space<vmem>>, vector<1x32xf32>
    %27 = vector.broadcast %26 : vector<1x32xf32> to vector<2x32xf32>
    %28 = arith.addf %25, %27 : vector<2x32xf32>
    %cst_17 = arith.constant 0.000000e+00 : f32
    %29 = vector.broadcast %cst_17 : f32 to vector<2x32xf32>
    %30 = arith.maximumf %28, %29 : vector<2x32xf32>
    %c0_18 = arith.constant 0 : index
    %c0_19 = arith.constant 0 : index
    %31 = vector.load %arg3[%c0_18, %c0_19] : memref<32x98xf32, #tpu.memory_space<vmem>>, vector<32x98xf32>
    %cst_20 = arith.constant dense<0.000000e+00> : vector<2x98xf32>
    %32 = tpu.matmul %30, %31, %cst_20 {dimension_numbers = #tpu.dot_dimension_numbers<[1], [0], [0], [1], [0, 0, 1, 1], [], []>} : vector<2x32xf32>, vector<32x98xf32>, vector<2x98xf32> -> vector<2x98xf32>
    %c3 = arith.constant 3 : index
    %c0_21 = arith.constant 0 : index
    %33 = vector.load %arg4[%c3, %c0_21] : memref<8x128xf32, #tpu.memory_space<vmem>>, vector<1x98xf32>
    %34 = vector.broadcast %33 : vector<1x98xf32> to vector<2x98xf32>
    %35 = arith.addf %32, %34 : vector<2x98xf32>
    %36 = tpu.iota {dimensions = array<i32: 1>} : vector<2x8xi32>
    %37 = vector.extract_strided_slice %35 {offsets = [0, 0], sizes = [2, 8], strides = [1, 1]} : vector<2x98xf32> to vector<2x8xf32>
    %38 = vector.extract_strided_slice %35 {offsets = [0, 8], sizes = [2, 6], strides = [1, 1]} : vector<2x98xf32> to vector<2x6xf32>
    %c0_i32 = arith.constant 0 : i32
    %39 = vector.broadcast %c0_i32 : i32 to vector<2x8xi32>
    %40 = arith.cmpi sgt, %36, %39 : vector<2x8xi32>
    %41 = arith.negf %37 : vector<2x8xf32>
    %42 = math.exp %41 : vector<2x8xf32>
    %cst_22 = arith.constant 1.000000e+00 : f32
    %43 = vector.broadcast %cst_22 : f32 to vector<2x8xf32>
    %44 = arith.addf %43, %42 : vector<2x8xf32>
    %45 = arith.divf %43, %44 : vector<2x8xf32>
    %cst_23 = arith.constant 0.000000e+00 : f32
    %46 = vector.broadcast %cst_23 : f32 to vector<2x8xf32>
    %47 = arith.select %40, %45, %46 : vector<2x8xi1>, vector<2x8xf32>
    %c0_24 = arith.constant 0 : index
    %c0_25 = arith.constant 0 : index
    %c0_26 = arith.constant 0 : index
    %48 = vector.load %arg5[%c0_24, %c0_25, %c0_26] : memref<2x8x8xf32, #tpu.memory_space<vmem>>, vector<2x1x8xf32>
    %49 = vector.shape_cast %48 : vector<2x1x8xf32> to vector<2x8xf32>
    %50 = vector.shape_cast %47 : vector<2x8xf32> to vector<2x1x8xf32>
    tpu.vector_store %arg5[%c0_24, %c0_25, %c0_26], %50 {strides = array<i32>} : memref<2x8x8xf32, #tpu.memory_space<vmem>>, vector<2x1x8xf32>,
    %cst_27 = arith.constant dense<0xFF800000> : vector<2xf32>
    %51 = vector.multi_reduction <maximumf>, %38, %cst_27 [1] : vector<2x6xf32> to vector<2xf32>
    %52 = vector.shape_cast %51 : vector<2xf32> to vector<2x1xf32>
    %53 = vector.broadcast %52 : vector<2x1xf32> to vector<2x6xf32>
    %54 = arith.subf %38, %53 : vector<2x6xf32>
    %55 = math.exp %54 : vector<2x6xf32>
    %cst_28 = arith.constant dense<0.000000e+00> : vector<2xf32>
    %56 = vector.multi_reduction <add>, %55, %cst_28 [1] : vector<2x6xf32> to vector<2xf32>
    %57 = vector.shape_cast %56 : vector<2xf32> to vector<2x1xf32>
    %58 = vector.broadcast %57 : vector<2x1xf32> to vector<2x6xf32>
    %59 = arith.divf %55, %58 : vector<2x6xf32>
    %c0_29 = arith.constant 0 : index
    %c0_30 = arith.constant 0 : index
    %c0_31 = arith.constant 0 : index
    %60 = vector.load %arg6[%c0_29, %c0_30, %c0_31] : memref<2x8x6xf32, #tpu.memory_space<vmem>>, vector<2x1x6xf32>
    %61 = vector.shape_cast %60 : vector<2x1x6xf32> to vector<2x6xf32>
    %62 = vector.shape_cast %59 : vector<2x6xf32> to vector<2x1x6xf32>
    tpu.vector_store %arg6[%c0_29, %c0_30, %c0_31], %62 {strides = array<i32>} : memref<2x8x6xf32, #tpu.memory_space<vmem>>, vector<2x1x6xf32>,
    %63 = vector.extract_strided_slice %35 {offsets = [0, 14], sizes = [2, 8], strides = [1, 1]} : vector<2x98xf32> to vector<2x8xf32>
    %64 = vector.extract_strided_slice %35 {offsets = [0, 22], sizes = [2, 6], strides = [1, 1]} : vector<2x98xf32> to vector<2x6xf32>
    %c1_i32 = arith.constant 1 : i32
    %65 = vector.broadcast %c1_i32 : i32 to vector<2x8xi32>
    %66 = arith.cmpi sgt, %36, %65 : vector<2x8xi32>
    %67 = arith.negf %63 : vector<2x8xf32>
    %68 = math.exp %67 : vector<2x8xf32>
    %cst_32 = arith.constant 1.000000e+00 : f32
    %69 = vector.broadcast %cst_32 : f32 to vector<2x8xf32>
    %70 = arith.addf %69, %68 : vector<2x8xf32>
    %71 = arith.divf %69, %70 : vector<2x8xf32>
    %cst_33 = arith.constant 0.000000e+00 : f32
    %72 = vector.broadcast %cst_33 : f32 to vector<2x8xf32>
    %73 = arith.select %66, %71, %72 : vector<2x8xi1>, vector<2x8xf32>
    %c0_34 = arith.constant 0 : index
    %c1_35 = arith.constant 1 : index
    %c0_36 = arith.constant 0 : index
    %74 = vector.load %arg5[%c0_34, %c1_35, %c0_36] : memref<2x8x8xf32, #tpu.memory_space<vmem>>, vector<2x1x8xf32>
    %75 = vector.shape_cast %74 : vector<2x1x8xf32> to vector<2x8xf32>
    %76 = vector.shape_cast %73 : vector<2x8xf32> to vector<2x1x8xf32>
    tpu.vector_store %arg5[%c0_34, %c1_35, %c0_36], %76 {strides = array<i32>} : memref<2x8x8xf32, #tpu.memory_space<vmem>>, vector<2x1x8xf32>,
    %cst_37 = arith.constant dense<0xFF800000> : vector<2xf32>
    %77 = vector.multi_reduction <maximumf>, %64, %cst_37 [1] : vector<2x6xf32> to vector<2xf32>
    %78 = vector.shape_cast %77 : vector<2xf32> to vector<2x1xf32>
    %79 = vector.broadcast %78 : vector<2x1xf32> to vector<2x6xf32>
    %80 = arith.subf %64, %79 : vector<2x6xf32>
    %81 = math.exp %80 : vector<2x6xf32>
    %cst_38 = arith.constant dense<0.000000e+00> : vector<2xf32>
    %82 = vector.multi_reduction <add>, %81, %cst_38 [1] : vector<2x6xf32> to vector<2xf32>
    %83 = vector.shape_cast %82 : vector<2xf32> to vector<2x1xf32>
    %84 = vector.broadcast %83 : vector<2x1xf32> to vector<2x6xf32>
    %85 = arith.divf %81, %84 : vector<2x6xf32>
    %c0_39 = arith.constant 0 : index
    %c1_40 = arith.constant 1 : index
    %c0_41 = arith.constant 0 : index
    %86 = vector.load %arg6[%c0_39, %c1_40, %c0_41] : memref<2x8x6xf32, #tpu.memory_space<vmem>>, vector<2x1x6xf32>
    %87 = vector.shape_cast %86 : vector<2x1x6xf32> to vector<2x6xf32>
    %88 = vector.shape_cast %85 : vector<2x6xf32> to vector<2x1x6xf32>
    tpu.vector_store %arg6[%c0_39, %c1_40, %c0_41], %88 {strides = array<i32>} : memref<2x8x6xf32, #tpu.memory_space<vmem>>, vector<2x1x6xf32>,
    %89 = vector.extract_strided_slice %35 {offsets = [0, 28], sizes = [2, 8], strides = [1, 1]} : vector<2x98xf32> to vector<2x8xf32>
    %90 = vector.extract_strided_slice %35 {offsets = [0, 36], sizes = [2, 6], strides = [1, 1]} : vector<2x98xf32> to vector<2x6xf32>
    %c2_i32 = arith.constant 2 : i32
    %91 = vector.broadcast %c2_i32 : i32 to vector<2x8xi32>
    %92 = arith.cmpi sgt, %36, %91 : vector<2x8xi32>
    %93 = arith.negf %89 : vector<2x8xf32>
    %94 = math.exp %93 : vector<2x8xf32>
    %cst_42 = arith.constant 1.000000e+00 : f32
    %95 = vector.broadcast %cst_42 : f32 to vector<2x8xf32>
    %96 = arith.addf %95, %94 : vector<2x8xf32>
    %97 = arith.divf %95, %96 : vector<2x8xf32>
    %cst_43 = arith.constant 0.000000e+00 : f32
    %98 = vector.broadcast %cst_43 : f32 to vector<2x8xf32>
    %99 = arith.select %92, %97, %98 : vector<2x8xi1>, vector<2x8xf32>
    %c0_44 = arith.constant 0 : index
    %c2_45 = arith.constant 2 : index
    %c0_46 = arith.constant 0 : index
    %100 = vector.load %arg5[%c0_44, %c2_45, %c0_46] : memref<2x8x8xf32, #tpu.memory_space<vmem>>, vector<2x1x8xf32>
    %101 = vector.shape_cast %100 : vector<2x1x8xf32> to vector<2x8xf32>
    %102 = vector.shape_cast %99 : vector<2x8xf32> to vector<2x1x8xf32>
    tpu.vector_store %arg5[%c0_44, %c2_45, %c0_46], %102 {strides = array<i32>} : memref<2x8x8xf32, #tpu.memory_space<vmem>>, vector<2x1x8xf32>,
    %cst_47 = arith.constant dense<0xFF800000> : vector<2xf32>
    %103 = vector.multi_reduction <maximumf>, %90, %cst_47 [1] : vector<2x6xf32> to vector<2xf32>
    %104 = vector.shape_cast %103 : vector<2xf32> to vector<2x1xf32>
    %105 = vector.broadcast %104 : vector<2x1xf32> to vector<2x6xf32>
    %106 = arith.subf %90, %105 : vector<2x6xf32>
    %107 = math.exp %106 : vector<2x6xf32>
    %cst_48 = arith.constant dense<0.000000e+00> : vector<2xf32>
    %108 = vector.multi_reduction <add>, %107, %cst_48 [1] : vector<2x6xf32> to vector<2xf32>
    %109 = vector.shape_cast %108 : vector<2xf32> to vector<2x1xf32>
    %110 = vector.broadcast %109 : vector<2x1xf32> to vector<2x6xf32>
    %111 = arith.divf %107, %110 : vector<2x6xf32>
    %c0_49 = arith.constant 0 : index
    %c2_50 = arith.constant 2 : index
    %c0_51 = arith.constant 0 : index
    %112 = vector.load %arg6[%c0_49, %c2_50, %c0_51] : memref<2x8x6xf32, #tpu.memory_space<vmem>>, vector<2x1x6xf32>
    %113 = vector.shape_cast %112 : vector<2x1x6xf32> to vector<2x6xf32>
    %114 = vector.shape_cast %111 : vector<2x6xf32> to vector<2x1x6xf32>
    tpu.vector_store %arg6[%c0_49, %c2_50, %c0_51], %114 {strides = array<i32>} : memref<2x8x6xf32, #tpu.memory_space<vmem>>, vector<2x1x6xf32>,
    %115 = vector.extract_strided_slice %35 {offsets = [0, 42], sizes = [2, 8], strides = [1, 1]} : vector<2x98xf32> to vector<2x8xf32>
    %116 = vector.extract_strided_slice %35 {offsets = [0, 50], sizes = [2, 6], strides = [1, 1]} : vector<2x98xf32> to vector<2x6xf32>
    %c3_i32 = arith.constant 3 : i32
    %117 = vector.broadcast %c3_i32 : i32 to vector<2x8xi32>
    %118 = arith.cmpi sgt, %36, %117 : vector<2x8xi32>
    %119 = arith.negf %115 : vector<2x8xf32>
    %120 = math.exp %119 : vector<2x8xf32>
    %cst_52 = arith.constant 1.000000e+00 : f32
    %121 = vector.broadcast %cst_52 : f32 to vector<2x8xf32>
    %122 = arith.addf %121, %120 : vector<2x8xf32>
    %123 = arith.divf %121, %122 : vector<2x8xf32>
    %cst_53 = arith.constant 0.000000e+00 : f32
    %124 = vector.broadcast %cst_53 : f32 to vector<2x8xf32>
    %125 = arith.select %118, %123, %124 : vector<2x8xi1>, vector<2x8xf32>
    %c0_54 = arith.constant 0 : index
    %c3_55 = arith.constant 3 : index
    %c0_56 = arith.constant 0 : index
    %126 = vector.load %arg5[%c0_54, %c3_55, %c0_56] : memref<2x8x8xf32, #tpu.memory_space<vmem>>, vector<2x1x8xf32>
    %127 = vector.shape_cast %126 : vector<2x1x8xf32> to vector<2x8xf32>
    %128 = vector.shape_cast %125 : vector<2x8xf32> to vector<2x1x8xf32>
    tpu.vector_store %arg5[%c0_54, %c3_55, %c0_56], %128 {strides = array<i32>} : memref<2x8x8xf32, #tpu.memory_space<vmem>>, vector<2x1x8xf32>,
    %cst_57 = arith.constant dense<0xFF800000> : vector<2xf32>
    %129 = vector.multi_reduction <maximumf>, %116, %cst_57 [1] : vector<2x6xf32> to vector<2xf32>
    %130 = vector.shape_cast %129 : vector<2xf32> to vector<2x1xf32>
    %131 = vector.broadcast %130 : vector<2x1xf32> to vector<2x6xf32>
    %132 = arith.subf %116, %131 : vector<2x6xf32>
    %133 = math.exp %132 : vector<2x6xf32>
    %cst_58 = arith.constant dense<0.000000e+00> : vector<2xf32>
    %134 = vector.multi_reduction <add>, %133, %cst_58 [1] : vector<2x6xf32> to vector<2xf32>
    %135 = vector.shape_cast %134 : vector<2xf32> to vector<2x1xf32>
    %136 = vector.broadcast %135 : vector<2x1xf32> to vector<2x6xf32>
    %137 = arith.divf %133, %136 : vector<2x6xf32>
    %c0_59 = arith.constant 0 : index
    %c3_60 = arith.constant 3 : index
    %c0_61 = arith.constant 0 : index
    %138 = vector.load %arg6[%c0_59, %c3_60, %c0_61] : memref<2x8x6xf32, #tpu.memory_space<vmem>>, vector<2x1x6xf32>
    %139 = vector.shape_cast %138 : vector<2x1x6xf32> to vector<2x6xf32>
    %140 = vector.shape_cast %137 : vector<2x6xf32> to vector<2x1x6xf32>
    tpu.vector_store %arg6[%c0_59, %c3_60, %c0_61], %140 {strides = array<i32>} : memref<2x8x6xf32, #tpu.memory_space<vmem>>, vector<2x1x6xf32>,
    %141 = vector.extract_strided_slice %35 {offsets = [0, 56], sizes = [2, 8], strides = [1, 1]} : vector<2x98xf32> to vector<2x8xf32>
    %142 = vector.extract_strided_slice %35 {offsets = [0, 64], sizes = [2, 6], strides = [1, 1]} : vector<2x98xf32> to vector<2x6xf32>
    %c4_i32 = arith.constant 4 : i32
    %143 = vector.broadcast %c4_i32 : i32 to vector<2x8xi32>
    %144 = arith.cmpi sgt, %36, %143 : vector<2x8xi32>
    %145 = arith.negf %141 : vector<2x8xf32>
    %146 = math.exp %145 : vector<2x8xf32>
    %cst_62 = arith.constant 1.000000e+00 : f32
    %147 = vector.broadcast %cst_62 : f32 to vector<2x8xf32>
    %148 = arith.addf %147, %146 : vector<2x8xf32>
    %149 = arith.divf %147, %148 : vector<2x8xf32>
    %cst_63 = arith.constant 0.000000e+00 : f32
    %150 = vector.broadcast %cst_63 : f32 to vector<2x8xf32>
    %151 = arith.select %144, %149, %150 : vector<2x8xi1>, vector<2x8xf32>
    %c0_64 = arith.constant 0 : index
    %c4 = arith.constant 4 : index
    %c0_65 = arith.constant 0 : index
    %152 = vector.load %arg5[%c0_64, %c4, %c0_65] : memref<2x8x8xf32, #tpu.memory_space<vmem>>, vector<2x1x8xf32>
    %153 = vector.shape_cast %152 : vector<2x1x8xf32> to vector<2x8xf32>
    %154 = vector.shape_cast %151 : vector<2x8xf32> to vector<2x1x8xf32>
    tpu.vector_store %arg5[%c0_64, %c4, %c0_65], %154 {strides = array<i32>} : memref<2x8x8xf32, #tpu.memory_space<vmem>>, vector<2x1x8xf32>,
    %cst_66 = arith.constant dense<0xFF800000> : vector<2xf32>
    %155 = vector.multi_reduction <maximumf>, %142, %cst_66 [1] : vector<2x6xf32> to vector<2xf32>
    %156 = vector.shape_cast %155 : vector<2xf32> to vector<2x1xf32>
    %157 = vector.broadcast %156 : vector<2x1xf32> to vector<2x6xf32>
    %158 = arith.subf %142, %157 : vector<2x6xf32>
    %159 = math.exp %158 : vector<2x6xf32>
    %cst_67 = arith.constant dense<0.000000e+00> : vector<2xf32>
    %160 = vector.multi_reduction <add>, %159, %cst_67 [1] : vector<2x6xf32> to vector<2xf32>
    %161 = vector.shape_cast %160 : vector<2xf32> to vector<2x1xf32>
    %162 = vector.broadcast %161 : vector<2x1xf32> to vector<2x6xf32>
    %163 = arith.divf %159, %162 : vector<2x6xf32>
    %c0_68 = arith.constant 0 : index
    %c4_69 = arith.constant 4 : index
    %c0_70 = arith.constant 0 : index
    %164 = vector.load %arg6[%c0_68, %c4_69, %c0_70] : memref<2x8x6xf32, #tpu.memory_space<vmem>>, vector<2x1x6xf32>
    %165 = vector.shape_cast %164 : vector<2x1x6xf32> to vector<2x6xf32>
    %166 = vector.shape_cast %163 : vector<2x6xf32> to vector<2x1x6xf32>
    tpu.vector_store %arg6[%c0_68, %c4_69, %c0_70], %166 {strides = array<i32>} : memref<2x8x6xf32, #tpu.memory_space<vmem>>, vector<2x1x6xf32>,
    %167 = vector.extract_strided_slice %35 {offsets = [0, 70], sizes = [2, 8], strides = [1, 1]} : vector<2x98xf32> to vector<2x8xf32>
    %168 = vector.extract_strided_slice %35 {offsets = [0, 78], sizes = [2, 6], strides = [1, 1]} : vector<2x98xf32> to vector<2x6xf32>
    %c5_i32 = arith.constant 5 : i32
    %169 = vector.broadcast %c5_i32 : i32 to vector<2x8xi32>
    %170 = arith.cmpi sgt, %36, %169 : vector<2x8xi32>
    %171 = arith.negf %167 : vector<2x8xf32>
    %172 = math.exp %171 : vector<2x8xf32>
    %cst_71 = arith.constant 1.000000e+00 : f32
    %173 = vector.broadcast %cst_71 : f32 to vector<2x8xf32>
    %174 = arith.addf %173, %172 : vector<2x8xf32>
    %175 = arith.divf %173, %174 : vector<2x8xf32>
    %cst_72 = arith.constant 0.000000e+00 : f32
    %176 = vector.broadcast %cst_72 : f32 to vector<2x8xf32>
    %177 = arith.select %170, %175, %176 : vector<2x8xi1>, vector<2x8xf32>
    %c0_73 = arith.constant 0 : index
    %c5 = arith.constant 5 : index
    %c0_74 = arith.constant 0 : index
    %178 = vector.load %arg5[%c0_73, %c5, %c0_74] : memref<2x8x8xf32, #tpu.memory_space<vmem>>, vector<2x1x8xf32>
    %179 = vector.shape_cast %178 : vector<2x1x8xf32> to vector<2x8xf32>
    %180 = vector.shape_cast %177 : vector<2x8xf32> to vector<2x1x8xf32>
    tpu.vector_store %arg5[%c0_73, %c5, %c0_74], %180 {strides = array<i32>} : memref<2x8x8xf32, #tpu.memory_space<vmem>>, vector<2x1x8xf32>,
    %cst_75 = arith.constant dense<0xFF800000> : vector<2xf32>
    %181 = vector.multi_reduction <maximumf>, %168, %cst_75 [1] : vector<2x6xf32> to vector<2xf32>
    %182 = vector.shape_cast %181 : vector<2xf32> to vector<2x1xf32>
    %183 = vector.broadcast %182 : vector<2x1xf32> to vector<2x6xf32>
    %184 = arith.subf %168, %183 : vector<2x6xf32>
    %185 = math.exp %184 : vector<2x6xf32>
    %cst_76 = arith.constant dense<0.000000e+00> : vector<2xf32>
    %186 = vector.multi_reduction <add>, %185, %cst_76 [1] : vector<2x6xf32> to vector<2xf32>
    %187 = vector.shape_cast %186 : vector<2xf32> to vector<2x1xf32>
    %188 = vector.broadcast %187 : vector<2x1xf32> to vector<2x6xf32>
    %189 = arith.divf %185, %188 : vector<2x6xf32>
    %c0_77 = arith.constant 0 : index
    %c5_78 = arith.constant 5 : index
    %c0_79 = arith.constant 0 : index
    %190 = vector.load %arg6[%c0_77, %c5_78, %c0_79] : memref<2x8x6xf32, #tpu.memory_space<vmem>>, vector<2x1x6xf32>
    %191 = vector.shape_cast %190 : vector<2x1x6xf32> to vector<2x6xf32>
    %192 = vector.shape_cast %189 : vector<2x6xf32> to vector<2x1x6xf32>
    tpu.vector_store %arg6[%c0_77, %c5_78, %c0_79], %192 {strides = array<i32>} : memref<2x8x6xf32, #tpu.memory_space<vmem>>, vector<2x1x6xf32>,
    %193 = vector.extract_strided_slice %35 {offsets = [0, 84], sizes = [2, 8], strides = [1, 1]} : vector<2x98xf32> to vector<2x8xf32>
    %194 = vector.extract_strided_slice %35 {offsets = [0, 92], sizes = [2, 6], strides = [1, 1]} : vector<2x98xf32> to vector<2x6xf32>
    %c6_i32 = arith.constant 6 : i32
    %195 = vector.broadcast %c6_i32 : i32 to vector<2x8xi32>
    %196 = arith.cmpi sgt, %36, %195 : vector<2x8xi32>
    %197 = arith.negf %193 : vector<2x8xf32>
    %198 = math.exp %197 : vector<2x8xf32>
    %cst_80 = arith.constant 1.000000e+00 : f32
    %199 = vector.broadcast %cst_80 : f32 to vector<2x8xf32>
    %200 = arith.addf %199, %198 : vector<2x8xf32>
    %201 = arith.divf %199, %200 : vector<2x8xf32>
    %cst_81 = arith.constant 0.000000e+00 : f32
    %202 = vector.broadcast %cst_81 : f32 to vector<2x8xf32>
    %203 = arith.select %196, %201, %202 : vector<2x8xi1>, vector<2x8xf32>
    %c0_82 = arith.constant 0 : index
    %c6 = arith.constant 6 : index
    %c0_83 = arith.constant 0 : index
    %204 = vector.load %arg5[%c0_82, %c6, %c0_83] : memref<2x8x8xf32, #tpu.memory_space<vmem>>, vector<2x1x8xf32>
    %205 = vector.shape_cast %204 : vector<2x1x8xf32> to vector<2x8xf32>
    %206 = vector.shape_cast %203 : vector<2x8xf32> to vector<2x1x8xf32>
    tpu.vector_store %arg5[%c0_82, %c6, %c0_83], %206 {strides = array<i32>} : memref<2x8x8xf32, #tpu.memory_space<vmem>>, vector<2x1x8xf32>,
    %cst_84 = arith.constant dense<0xFF800000> : vector<2xf32>
    %207 = vector.multi_reduction <maximumf>, %194, %cst_84 [1] : vector<2x6xf32> to vector<2xf32>
    %208 = vector.shape_cast %207 : vector<2xf32> to vector<2x1xf32>
    %209 = vector.broadcast %208 : vector<2x1xf32> to vector<2x6xf32>
    %210 = arith.subf %194, %209 : vector<2x6xf32>
    %211 = math.exp %210 : vector<2x6xf32>
    %cst_85 = arith.constant dense<0.000000e+00> : vector<2xf32>
    %212 = vector.multi_reduction <add>, %211, %cst_85 [1] : vector<2x6xf32> to vector<2xf32>
    %213 = vector.shape_cast %212 : vector<2xf32> to vector<2x1xf32>
    %214 = vector.broadcast %213 : vector<2x1xf32> to vector<2x6xf32>
    %215 = arith.divf %211, %214 : vector<2x6xf32>
    %c0_86 = arith.constant 0 : index
    %c6_87 = arith.constant 6 : index
    %c0_88 = arith.constant 0 : index
    %216 = vector.load %arg6[%c0_86, %c6_87, %c0_88] : memref<2x8x6xf32, #tpu.memory_space<vmem>>, vector<2x1x6xf32>
    %217 = vector.shape_cast %216 : vector<2x1x6xf32> to vector<2x6xf32>
    %218 = vector.shape_cast %215 : vector<2x6xf32> to vector<2x1x6xf32>
    tpu.vector_store %arg6[%c0_86, %c6_87, %c0_88], %218 {strides = array<i32>} : memref<2x8x6xf32, #tpu.memory_space<vmem>>, vector<2x1x6xf32>,
    %219 = tpu.iota {dimensions = array<i32: 1>} : vector<2x6xi32>
    %cst_89 = arith.constant 0.000000e+00 : f32
    %220 = vector.broadcast %cst_89 : f32 to vector<2x8xf32>
    %c0_90 = arith.constant 0 : index
    %c7 = arith.constant 7 : index
    %c0_91 = arith.constant 0 : index
    %221 = vector.load %arg5[%c0_90, %c7, %c0_91] : memref<2x8x8xf32, #tpu.memory_space<vmem>>, vector<2x1x8xf32>
    %222 = vector.shape_cast %221 : vector<2x1x8xf32> to vector<2x8xf32>
    %223 = vector.shape_cast %220 : vector<2x8xf32> to vector<2x1x8xf32>
    tpu.vector_store %arg5[%c0_90, %c7, %c0_91], %223 {strides = array<i32>} : memref<2x8x8xf32, #tpu.memory_space<vmem>>, vector<2x1x8xf32>,
    %c5_i32_92 = arith.constant 5 : i32
    %224 = vector.broadcast %c5_i32_92 : i32 to vector<2x6xi32>
    %225 = arith.cmpi eq, %219, %224 : vector<2x6xi32>
    %226 = arith.extui %225 : vector<2x6xi1> to vector<2x6xi32>
    %227 = arith.sitofp %226 : vector<2x6xi32> to vector<2x6xf32>
    %c0_93 = arith.constant 0 : index
    %c7_94 = arith.constant 7 : index
    %c0_95 = arith.constant 0 : index
    %228 = vector.load %arg6[%c0_93, %c7_94, %c0_95] : memref<2x8x6xf32, #tpu.memory_space<vmem>>, vector<2x1x6xf32>
    %229 = vector.shape_cast %228 : vector<2x1x6xf32> to vector<2x6xf32>
    %230 = vector.shape_cast %227 : vector<2x6xf32> to vector<2x1x6xf32>
    tpu.vector_store %arg6[%c0_93, %c7_94, %c0_95], %230 {strides = array<i32>} : memref<2x8x6xf32, #tpu.memory_space<vmem>>, vector<2x1x6xf32>,
    return
  }
}

</mosaic_0001>

<llo_original>
// kernel: invae_forward.1
$region0: #{invae_forward.1}
  #allocation0 [shape = 'u32[]', space=smem, size = 0x4, offset = 0x4, fixed_abs, tag = 'smem constant byte address 0x4 - core index']
  #allocation1 [shape = 'u32[144,128]{1,0:T(1,128)}', space=vmem, size = 0x12000, scoped, tag = 'internal scratch']
  %s0 = inlined_call_operand.vmem [shape: f32[2,112], index: 0, kind: input, shape index: {}]
  %s1 = inlined_call_operand.vmem [shape: f32[2,16], index: 1, kind: input, shape index: {}]
  %s2 = inlined_call_operand.vmem [shape: f32[160,64], index: 2, kind: input, shape index: {}]
  %s3 = inlined_call_operand.vmem [shape: f32[32,98], index: 3, kind: input, shape index: {}]
  %s4 = inlined_call_operand.vmem [shape: f32[8,128], index: 4, kind: input, shape index: {}]
  %s5 = inlined_call_operand.hbm [shape: f32[2,8,8], index: 5, kind: output, shape index: {0}]
  %s6 = inlined_call_operand.vmem [shape: f32[2,8,6], index: 6, kind: output, shape index: {1}]
  %s7 = inlined_call_operand.vmem [shape: f32[2,48], index: 7, kind: output, shape index: {2}]
  %8 = xla_tuple %s5, %s6, %s7
  %s9 = sld [smem:[#allocation0]]
  $region46: #{invae_forward.1} parent=0
    _
  %s11 = ssub.s32 1, %s9
  %s12 = scalar_select 0, %s11, %s9
  $region1: #{invae_forward.1} parent=0
    #allocation2 [shape = 'u8[8192]{0}', space=vmem, size = 0x2000, scoped, tag = 'output window, operand 0, single buffered']
    #allocation3 [shape = 's32[1]{0}', space=sflag, size = 0x4, scoped, tag = 'scoped memory for invae_forward.1']
    %13 = vsyncpa [#allocation3], 0
    // Predicated region
    $region2: #{invae_forward.1} parent=1 // pred_check
      _
    $region3: #{invae_forward.1} parent=1 // pred_check_branch
      %15 = sbr.rel (0) target = $region5
    $region4: #{invae_forward.1} parent=1 // pred_region
      _
    $region5: #{invae_forward.1} parent=1 // pred_fallthru
      _
    // Predicated region
    $region6: #{invae_forward.1} parent=1 // pred_check
      _
    $region7: #{invae_forward.1} parent=1 // pred_check_branch
      %17 = sbr.rel (0) target = $region9
    $region8: #{invae_forward.1} parent=1 // pred_region
      _
    $region9: #{invae_forward.1} parent=1 // pred_fallthru
      _
    // Predicated region
    $region10: #{invae_forward.1} parent=1 // pred_check
      _
    $region11: #{invae_forward.1} parent=1 // pred_check_branch
      %19 = sbr.rel (0) target = $region13
    $region12: #{invae_forward.1} parent=1 // pred_region
      _
    $region13: #{invae_forward.1} parent=1 // pred_fallthru
      _
    // Predicated region
    $region14: #{invae_forward.1} parent=1 // pred_check
      _
    $region15: #{invae_forward.1} parent=1 // pred_check_branch
      %21 = sbr.rel (0) target = $region17
    $region16: #{invae_forward.1} parent=1 // pred_region
      _
    $region17: #{invae_forward.1} parent=1 // pred_fallthru
      _
    // Predicated region
    $region18: #{invae_forward.1} parent=1 // pred_check
      _
    $region19: #{invae_forward.1} parent=1 // pred_check_branch
      %23 = sbr.rel (0) target = $region21
    $region20: #{invae_forward.1} parent=1 // pred_region
      _
    $region21: #{invae_forward.1} parent=1 // pred_fallthru
      _
    %v24 = vld [vmem:[%s0] sm:$0x3]
    %v25 = vld [vmem:[%s2] sm:$0xff]
    %v26 = vld [vmem:[%s2 + $0x8] sm:$0xff]
    %v27 = vld [vmem:[%s2 + $0x10] sm:$0xff]
    %v28 = vld [vmem:[%s2 + $0x18] sm:$0xff]
    %v29 = vld [vmem:[%s2 + $0x20] sm:$0xff]
    %v30 = vld [vmem:[%s2 + $0x28] sm:$0xff]
    %v31 = vld [vmem:[%s2 + $0x30] sm:$0xff]
    %v32 = vld [vmem:[%s2 + $0x38] sm:$0xff]
    %v33 = vld [vmem:[%s2 + $0x40] sm:$0xff]
    %v34 = vld [vmem:[%s2 + $0x48] sm:$0xff]
    %v35 = vld [vmem:[%s2 + $0x50] sm:$0xff]
    %v36 = vld [vmem:[%s2 + $0x58] sm:$0xff]
    %v37 = vld [vmem:[%s2 + $0x60] sm:$0xff]
    %v38 = vld [vmem:[%s2 + $0x68] sm:$0xff]
    %vm39 = vcmask 916480
    %v41 = vsel %vm39, %v24, 0
    %43 = vmatprep.subr.mxu0 0.0
    %44 = vmatpush1.msra.mxu0 %v25
    %45 = vmatprep.subr.mxu0 0.0
    %46 = vmatpush1.msra.mxu0 %v26
    %47 = vmatprep.subr.mxu0 0.0
    %48 = vmatpush1.msra.mxu0 %v27
    %49 = vmatprep.subr.mxu0 0.0
    %50 = vmatpush1.msra.mxu0 %v28
    %51 = vmatprep.subr.mxu0 0.0
    %52 = vmatpush1.msra.mxu0 %v29
    %53 = vmatprep.subr.mxu0 0.0
    %54 = vmatpush1.msra.mxu0 %v30
    %55 = vmatprep.subr.mxu0 0.0
    %56 = vmatpush1.msra.mxu0 %v31
    %57 = vmatprep.subr.mxu0 0.0
    %58 = vmatpush1.msra.mxu0 %v32
    %59 = vmatprep.subr.mxu0 0.0
    %60 = vmatpush1.msra.mxu0 %v33
    %61 = vmatprep.subr.mxu0 0.0
    %62 = vmatpush1.msra.mxu0 %v34
    %63 = vmatprep.subr.mxu0 0.0
    %64 = vmatpush1.msra.mxu0 %v35
    %65 = vmatprep.subr.mxu0 0.0
    %66 = vmatpush1.msra.mxu0 %v36
    %67 = vmatprep.subr.mxu0 0.0
    %68 = vmatpush1.msra.mxu0 %v37
    %69 = vmatprep.subr.mxu0 0.0
    %70 = vmatpush1.msra.mxu0 %v38
    %71 = vmatprep.subr.mxu0 0.0
    %72 = vmatpush1.msra.mxu0 0.0
    %73 = vmatprep.subr.mxu0 0.0
    %74 = vmatpush1.msra.mxu0 0.0
    %75 = vmatprep.subr.mxu0 0.0
    %76 = vmatpush1.msra.mxu0 0.0
    %77 = vmatprep.subr.mxu0 0.0
    %78 = vmatpush1.msra.mxu0 0.0
    %79 = vmatprep.subr.mxu0 0.0
    %80 = vmatpush1.msra.mxu0 0.0
    %81 = vmatprep.subr.mxu0 0.0
    %82 = vmatpush1.msra.mxu0 0.0
    %83 = vmatprep.subr.mxu0 0.0
    %84 = vmatpush1.msra.mxu0 0.0
    %85 = vmatprep.subr.mxu0 0.0
    %86 = vmatpush1.msra.mxu0 0.0
    %87 = vmatprep.subr.mxu0 0.0
    %88 = vmatpush1.msra.mxu0 0.0
    %89 = vmatprep.subr.mxu0 0.0
    %90 = vmatpush1.msra.mxu0 0.0
    %91 = vmatprep.subr.mxu0 0.0
    %92 = vmatpush1.msra.mxu0 0.0
    %93 = vmatprep.subr.mxu0 0.0
    %94 = vmatpush1.msra.mxu0 0.0
    %95 = vmatprep.subr.mxu0 0.0
    %96 = vmatpush1.msra.mxu0 0.0
    %97 = vmatprep.subr.mxu0 0.0
    %98 = vmatpush1.msra.mxu0 0.0
    %99 = vmatprep.subr.mxu0 0.0
    %100 = vmatpush1.msra.mxu0 0.0
    %101 = vmatprep.subr.mxu0 0.0
    %102 = vmatpush1.msra.mxu0 0.0
    %103 = vmatprep.subr.mxu0 0.0
    %104 = vmatpush1.msra.mxu0 0.0
    %105 = vmatprep.subr.mxu0 0.0
    %106 = vmatpush1.msra.mxu0 0.0
    %107 = vmatprep.mubr.f32.mxu0 0.0
    %108 = vmatmul.mubr.f32.gmra.mrb[0].mxu0 %v41
    %v109 = vpop.f32.mrb[0].mxu0
    %v110 = vadd.f32 0.0, %v109
    %v111 = vpop.f32.mrb[0].mxu0
    %112 = vdwg.mxu0
    %v113 = vld [vmem:[%s4] sm:$0x1]
    %v114 = vlaneseq
    %v115 = vshrl.u32 %v114, 7
    %v116 = vsub.s32 0, %v115
    %v117 = vrot.slane %v113, %v116
    %v118 = vadd.f32 %v110, %v117
    %v119 = vmax.f32 %v118, 0.0
    %v120 = vld [vmem:[%s2 + $0x70] sm:$0xff]
    %v121 = vld [vmem:[%s2 + $0x78] sm:$0xff]
    %v122 = vld [vmem:[%s2 + $0x80] sm:$0xff]
    %v123 = vld [vmem:[%s2 + $0x88] sm:$0xff]
    %v124 = vld [vmem:[%s4 + $0x1] sm:$0x1]
    %v125 = vlaneseq
    %v126 = vshrl.u32 %v125, 7
    %v127 = vsub.s32 0, %v126
    %v128 = vrot.slane %v124, %v127
    %vm129 = vcmask 261120
    %v131 = vsel %vm129, %v119, 0
    %133 = vmatprep.subr.mxu0 0.0
    %134 = vmatpush1.msra.mxu0 %v120
    %135 = vmatprep.subr.mxu0 0.0
    %136 = vmatpush1.msra.mxu0 %v121
    %137 = vmatprep.subr.mxu0 0.0
    %138 = vmatpush1.msra.mxu0 %v122
    %139 = vmatprep.subr.mxu0 0.0
    %140 = vmatpush1.msra.mxu0 %v123
    %141 = vmatprep.subr.mxu0 0.0
    %142 = vmatpush1.msra.mxu0 0.0
    %143 = vmatprep.subr.mxu0 0.0
    %144 = vmatpush1.msra.mxu0 0.0
    %145 = vmatprep.subr.mxu0 0.0
    %146 = vmatpush1.msra.mxu0 0.0
    %147 = vmatprep.subr.mxu0 0.0
    %148 = vmatpush1.msra.mxu0 0.0
    %149 = vmatprep.subr.mxu0 0.0
    %150 = vmatpush1.msra.mxu0 0.0
    %151 = vmatprep.subr.mxu0 0.0
    %152 = vmatpush1.msra.mxu0 0.0
    %153 = vmatprep.subr.mxu0 0.0
    %154 = vmatpush1.msra.mxu0 0.0
    %155 = vmatprep.subr.mxu0 0.0
    %156 = vmatpush1.msra.mxu0 0.0
    %157 = vmatprep.subr.mxu0 0.0
    %158 = vmatpush1.msra.mxu0 0.0
    %159 = vmatprep.subr.mxu0 0.0
    %160 = vmatpush1.msra.mxu0 0.0
    %161 = vmatprep.subr.mxu0 0.0
    %162 = vmatpush1.msra.mxu0 0.0
    %163 = vmatprep.subr.mxu0 0.0
    %164 = vmatpush1.msra.mxu0 0.0
    %165 = vmatprep.subr.mxu0 0.0
    %166 = vmatpush1.msra.mxu0 0.0
    %167 = vmatprep.subr.mxu0 0.0
    %168 = vmatpush1.msra.mxu0 0.0
    %169 = vmatprep.subr.mxu0 0.0
    %170 = vmatpush1.msra.mxu0 0.0
    %171 = vmatprep.subr.mxu0 0.0
    %172 = vmatpush1.msra.mxu0 0.0
    %173 = vmatprep.subr.mxu0 0.0
    %174 = vmatpush1.msra.mxu0 0.0
    %175 = vmatprep.subr.mxu0 0.0
    %176 = vmatpush1.msra.mxu0 0.0
    %177 = vmatprep.subr.mxu0 0.0
    %178 = vmatpush1.msra.mxu0 0.0
    %179 = vmatprep.subr.mxu0 0.0
    %180 = vmatpush1.msra.mxu0 0.0
    %181 = vmatprep.subr.mxu0 0.0
    %182 = vmatpush1.msra.mxu0 0.0
    %183 = vmatprep.subr.mxu0 0.0
    %184 = vmatpush1.msra.mxu0 0.0
    %185 = vmatprep.subr.mxu0 0.0
    %186 = vmatpush1.msra.mxu0 0.0
    %187 = vmatprep.subr.mxu0 0.0
    %188 = vmatpush1.msra.mxu0 0.0
    %189 = vmatprep.subr.mxu0 0.0
    %190 = vmatpush1.msra.mxu0 0.0
    %191 = vmatprep.subr.mxu0 0.0
    %192 = vmatpush1.msra.mxu0 0.0
    %193 = vmatprep.subr.mxu0 0.0
    %194 = vmatpush1.msra.mxu0 0.0
    %195 = vmatprep.subr.mxu0 0.0
    %196 = vmatpush1.msra.mxu0 0.0
    %197 = vmatprep.mubr.f32.mxu0 0.0
    %198 = vmatmul.mubr.f32.gmra.mrb[0].mxu0 %v131
    %v199 = vpop.f32.mrb[0].mxu0
    %v200 = vadd.f32 %v128, %v199
    %v201 = vpop.f32.mrb[0].mxu0
    %202 = vdwg.mxu0
    %v203 = vmul.f32 %v200, 1.442695
    %v204 = vpow.pop %v203
    %v205 = vld [vmem:[%s1] sm:$0x3]
    %207 = vrot.lane.b32.xlu0 %v205, 16
    %v208 = vpop.permute.xlu0 %207
    %v210 = vmul.f32 %v204, %v208
    %212 = vrot.lane.b32.xlu0 %v210, 112
    %v213 = vpop.permute.xlu0 %212
    %v215 = vadd.f32 %v200, %v213
    %vm216 = vcmask 254976
    %217 = vst.msk [vmem:[%s7] sm:$0x3] %vm216, %v200
    %219 = vrot.lane.b32.xlu0 %v204, 16
    %v220 = vpop.permute.xlu0 %219
    %vm222 = vcmask 386304
    %223 = vst.msk [vmem:[%s7] sm:$0x3] %vm222, %v220
    %v224 = vld [vmem:[%s2 + $0x90] sm:$0xff]
    %v225 = vld [vmem:[%s2 + $0x98] sm:$0xff]
    %227 = vrot.lane.b32.xlu0 %v110, 96
    %v228 = vpop.permute.xlu0 %227
    %vm230 = vcmask 130048
    %v232 = vsel %vm230, %v215, 0
    %234 = vmatprep.subr.mxu0 0.0
    %235 = vmatpush1.msra.mxu0 %v224
    %236 = vmatprep.subr.mxu0 0.0
    %237 = vmatpush1.msra.mxu0 %v225
    %238 = vmatprep.subr.mxu0 0.0
    %239 = vmatpush1.msra.mxu0 0.0
    %240 = vmatprep.subr.mxu0 0.0
    %241 = vmatpush1.msra.mxu0 0.0
    %242 = vmatprep.subr.mxu0 0.0
    %243 = vmatpush1.msra.mxu0 0.0
    %244 = vmatprep.subr.mxu0 0.0
    %245 = vmatpush1.msra.mxu0 0.0
    %246 = vmatprep.subr.mxu0 0.0
    %247 = vmatpush1.msra.mxu0 0.0
    %248 = vmatprep.subr.mxu0 0.0
    %249 = vmatpush1.msra.mxu0 0.0
    %250 = vmatprep.subr.mxu0 0.0
    %251 = vmatpush1.msra.mxu0 0.0
    %252 = vmatprep.subr.mxu0 0.0
    %253 = vmatpush1.msra.mxu0 0.0
    %254 = vmatprep.subr.mxu0 0.0
    %255 = vmatpush1.msra.mxu0 0.0
    %256 = vmatprep.subr.mxu0 0.0
    %257 = vmatpush1.msra.mxu0 0.0
    %258 = vmatprep.subr.mxu0 0.0
    %259 = vmatpush1.msra.mxu0 0.0
    %260 = vmatprep.subr.mxu0 0.0
    %261 = vmatpush1.msra.mxu0 0.0
    %262 = vmatprep.subr.mxu0 0.0
    %263 = vmatpush1.msra.mxu0 0.0
    %264 = vmatprep.subr.mxu0 0.0
    %265 = vmatpush1.msra.mxu0 0.0
    %266 = vmatprep.subr.mxu0 0.0
    %267 = vmatpush1.msra.mxu0 0.0
    %268 = vmatprep.subr.mxu0 0.0
    %269 = vmatpush1.msra.mxu0 0.0
    %270 = vmatprep.subr.mxu0 0.0
    %271 = vmatpush1.msra.mxu0 0.0
    %272 = vmatprep.subr.mxu0 0.0
    %273 = vmatpush1.msra.mxu0 0.0
    %274 = vmatprep.subr.mxu0 0.0
    %275 = vmatpush1.msra.mxu0 0.0
    %276 = vmatprep.subr.mxu0 0.0
    %277 = vmatpush1.msra.mxu0 0.0
    %278 = vmatprep.subr.mxu0 0.0
    %279 = vmatpush1.msra.mxu0 0.0
    %280 = vmatprep.subr.mxu0 0.0
    %281 = vmatpush1.msra.mxu0 0.0
    %282 = vmatprep.subr.mxu0 0.0
    %283 = vmatpush1.msra.mxu0 0.0
    %284 = vmatprep.subr.mxu0 0.0
    %285 = vmatpush1.msra.mxu0 0.0
    %286 = vmatprep.subr.mxu0 0.0
    %287 = vmatpush1.msra.mxu0 0.0
    %288 = vmatprep.subr.mxu0 0.0
    %289 = vmatpush1.msra.mxu0 0.0
    %290 = vmatprep.subr.mxu0 0.0
    %291 = vmatpush1.msra.mxu0 0.0
    %292 = vmatprep.subr.mxu0 0.0
    %293 = vmatpush1.msra.mxu0 0.0
    %294 = vmatprep.subr.mxu0 0.0
    %295 = vmatpush1.msra.mxu0 0.0
    %296 = vmatprep.subr.mxu0 0.0
    %297 = vmatpush1.msra.mxu0 0.0
    %298 = vmatprep.mubr.f32.mxu0 0.0
    %299 = vmatmul.mubr.f32.gmra.mrb[0].mxu0 %v232
    %v300 = vpop.f32.mrb[0].mxu0
    %v301 = vadd.f32 %v228, %v300
    %v302 = vpop.f32.mrb[0].mxu0
    %303 = vdwg.mxu0
    %v304 = vld [vmem:[%s4 + $0x2] sm:$0x1]
    %v305 = vlaneseq
    %v306 = vshrl.u32 %v305, 7
    %v307 = vsub.s32 0, %v306
    %v308 = vrot.slane %v304, %v307
    %v309 = vadd.f32 %v301, %v308
    %v310 = vmax.f32 %v309, 0.0
    %v311 = vld [vmem:[%s3] sm:$0xff]
    %v312 = vld [vmem:[%s3 + $0x8] sm:$0xff]
    %v313 = vld [vmem:[%s3 + $0x10] sm:$0xff]
    %v314 = vld [vmem:[%s3 + $0x18] sm:$0xff]
    %v315 = vld [vmem:[%s4 + $0x3] sm:$0x1]
    %v316 = vlaneseq
    %v317 = vshrl.u32 %v316, 7
    %v318 = vsub.s32 0, %v317
    %v319 = vrot.slane %v315, %v318
    %v321 = vsel %vm129, %v310, 0
    %323 = vmatprep.subr.mxu0 0.0
    %324 = vmatpush1.msra.mxu0 %v311
    %325 = vmatprep.subr.mxu0 0.0
    %326 = vmatpush1.msra.mxu0 %v312
    %327 = vmatprep.subr.mxu0 0.0
    %328 = vmatpush1.msra.mxu0 %v313
    %329 = vmatprep.subr.mxu0 0.0
    %330 = vmatpush1.msra.mxu0 %v314
    %331 = vmatprep.subr.mxu0 0.0
    %332 = vmatpush1.msra.mxu0 0.0
    %333 = vmatprep.subr.mxu0 0.0
    %334 = vmatpush1.msra.mxu0 0.0
    %335 = vmatprep.subr.mxu0 0.0
    %336 = vmatpush1.msra.mxu0 0.0
    %337 = vmatprep.subr.mxu0 0.0
    %338 = vmatpush1.msra.mxu0 0.0
    %339 = vmatprep.subr.mxu0 0.0
    %340 = vmatpush1.msra.mxu0 0.0
    %341 = vmatprep.subr.mxu0 0.0
    %342 = vmatpush1.msra.mxu0 0.0
    %343 = vmatprep.subr.mxu0 0.0
    %344 = vmatpush1.msra.mxu0 0.0
    %345 = vmatprep.subr.mxu0 0.0
    %346 = vmatpush1.msra.mxu0 0.0
    %347 = vmatprep.subr.mxu0 0.0
    %348 = vmatpush1.msra.mxu0 0.0
    %349 = vmatprep.subr.mxu0 0.0
    %350 = vmatpush1.msra.mxu0 0.0
    %351 = vmatprep.subr.mxu0 0.0
    %352 = vmatpush1.msra.mxu0 0.0
    %353 = vmatprep.subr.mxu0 0.0
    %354 = vmatpush1.msra.mxu0 0.0
    %355 = vmatprep.subr.mxu0 0.0
    %356 = vmatpush1.msra.mxu0 0.0
    %357 = vmatprep.subr.mxu0 0.0
    %358 = vmatpush1.msra.mxu0 0.0
    %359 = vmatprep.subr.mxu0 0.0
    %360 = vmatpush1.msra.mxu0 0.0
    %361 = vmatprep.subr.mxu0 0.0
    %362 = vmatpush1.msra.mxu0 0.0
    %363 = vmatprep.subr.mxu0 0.0
    %364 = vmatpush1.msra.mxu0 0.0
    %365 = vmatprep.subr.mxu0 0.0
    %366 = vmatpush1.msra.mxu0 0.0
    %367 = vmatprep.subr.mxu0 0.0
    %368 = vmatpush1.msra.mxu0 0.0
    %369 = vmatprep.subr.mxu0 0.0
    %370 = vmatpush1.msra.mxu0 0.0
    %371 = vmatprep.subr.mxu0 0.0
    %372 = vmatpush1.msra.mxu0 0.0
    %373 = vmatprep.subr.mxu0 0.0
    %374 = vmatpush1.msra.mxu0 0.0
    %375 = vmatprep.subr.mxu0 0.0
    %376 = vmatpush1.msra.mxu0 0.0
    %377 = vmatprep.subr.mxu0 0.0
    %378 = vmatpush1.msra.mxu0 0.0
    %379 = vmatprep.subr.mxu0 0.0
    %380 = vmatpush1.msra.mxu0 0.0
    %381 = vmatprep.subr.mxu0 0.0
    %382 = vmatpush1.msra.mxu0 0.0
    %383 = vmatprep.subr.mxu0 0.0
    %384 = vmatpush1.msra.mxu0 0.0
    %385 = vmatprep.subr.mxu0 0.0
    %386 = vmatpush1.msra.mxu0 0.0
    %387 = vmatprep.mubr.f32.mxu0 0.0
    %388 = vmatmul.mubr.f32.gmra.mrb[0].mxu0 %v321
    %v389 = vpop.f32.mrb[0].mxu0
    %v390 = vadd.f32 %v319, %v389
    %v391 = vpop.f32.mrb[0].mxu0
    %392 = vdwg.mxu0
    %v393 = vlaneseq
    %v394 = vand.u32 %v393, 127
    %vm395 = vcmp.gt.s32.totalorder %v394, 0
    %v396 = vxor.u32 %v390, 2147483648
    %v397 = vmul.f32 %v396, 1.442695
    %v398 = vpow.pop %v397
    %v399 = vadd.f32 %v398, 1.0
    %v400 = vrcp.pop %v399
    %v401 = vmul.f32 1.0, %v400
    %v402 = vsel %vm395, %v401, 0.0
    %v405 = vunpack.c.l.s4 1966171168
    %v406 = vunpack.c.0.s8 %v405
    %v407 = vlaneseq
    %v408 = vshrl.u32 %v407, 7
    %v409 = vsub.s32 %v406, %v408
    %v410 = vrot.slane %v402, %v409
    %v411 = vcombine.high %v410, %v410
    %v413 = vunpack.c.l.s4 1966171168
    %v414 = vunpack.c.0.s8 %v413
    %v415 = vlaneseq
    %v416 = vshrl.u32 %v415, 7
    %v417 = vsub.s32 %v414, %v416
    %v418 = vrot.slane %v410, %v417
    %v420 = vunpack.c.l.s4 1966171168
    %v421 = vunpack.c.0.s8 %v420
    %v422 = vlaneseq
    %v423 = vshrl.u32 %v422, 7
    %v424 = vsub.s32 %v421, %v423
    %v425 = vrot.slane %v411, %v424
    %vm428 = vcmask 57344
    %429 = vst.msk [vmem:[#allocation2] sm:$0x1] %vm428, %v418
    %430 = vst.msk [vmem:[#allocation2 + $0x8] sm:$0x1] %vm428, %v425
    %vm431 = vcmask 107584
    %v432 = vsel %vm431, %v390, -inf
    %433 = vmax.xlane.f32.xlu0 %v432
    %v434 = vpop.xlane.xlu0 %433
    %v435 = vsub.f32 %v390, %v434
    %v436 = vmul.f32 %v435, 1.442695
    %v437 = vpow.pop %v436
    %439 = vrot.lane.b32.xlu0 %v437, 120
    %v440 = vpop.permute.xlu0 %439
    %vm442 = vcmask 41984
    %v443 = vsel %vm442, %v440, 0.0
    %444 = vadd.xlane.f32.xlu0 %v443
    %v445 = vpop.xlane.xlu0 %444
    %v446 = vrcp.pop %v445
    %v447 = vmul.f32 %v437, %v446
    %v450 = vunpack.c.l.s4 1966171168
    %v451 = vunpack.c.0.s8 %v450
    %v452 = vlaneseq
    %v453 = vshrl.u32 %v452, 7
    %v454 = vsub.s32 %v451, %v453
    %v455 = vrot.slane %v447, %v454
    %v456 = vcombine.high %v455, %v455
    %v458 = vunpack.c.l.s4 1966171168
    %v459 = vunpack.c.0.s8 %v458
    %v460 = vlaneseq
    %v461 = vshrl.u32 %v460, 7
    %v462 = vsub.s32 %v459, %v461
    %v463 = vrot.slane %v455, %v462
    %v465 = vunpack.c.l.s4 1966171168
    %v466 = vunpack.c.0.s8 %v465
    %v467 = vlaneseq
    %v468 = vshrl.u32 %v467, 7
    %v469 = vsub.s32 %v466, %v468
    %v470 = vrot.slane %v456, %v469
    %v471 = vlaneseq
    %v472 = vshrl.u32 %v471, 7
    %v473 = vsub.s32 0, %v472
    %v474 = vrot.slane %v463, %v473
    %v475 = vlaneseq
    %v476 = vshrl.u32 %v475, 7
    %v477 = vsub.s32 0, %v476
    %v478 = vrot.slane %v470, %v477
    %479 = vrot.lane.b32.xlu0 %v474, 120
    %v480 = vpop.permute.xlu0 %479
    %481 = vrot.lane.b32.xlu0 %v478, 120
    %v482 = vpop.permute.xlu0 %481
    %vm485 = vcmask 40960
    %486 = vst.msk [vmem:[%s6] sm:$0x1] %vm485, %v480
    %487 = vst.msk [vmem:[%s6 + $0x8] sm:$0x1] %vm485, %v482
    %vm488 = vcmp.gt.s32.totalorder %v394, 1
    %490 = vrot.lane.b32.xlu0 %v401, 114
    %v491 = vpop.permute.xlu0 %490
    %v493 = vsel %vm488, %v491, 0.0
    %v496 = vunpack.c.l.s4 1966171168
    %v497 = vunpack.c.0.s8 %v496
    %v498 = vlaneseq
    %v499 = vshrl.u32 %v498, 7
    %v500 = vsub.s32 %v497, %v499
    %v501 = vrot.slane %v493, %v500
    %v502 = vcombine.high %v501, %v501
    %v504 = vunpack.c.l.s4 1966171168
    %v505 = vunpack.c.0.s8 %v504
    %v506 = vlaneseq
    %v507 = vshrl.u32 %v506, 7
    %v508 = vsub.s32 %v505, %v507
    %v509 = vrot.slane %v501, %v508
    %v511 = vunpack.c.l.s4 1966171168
    %v512 = vunpack.c.0.s8 %v511
    %v513 = vlaneseq
    %v514 = vshrl.u32 %v513, 7
    %v515 = vsub.s32 %v512, %v514
    %v516 = vrot.slane %v502, %v515
    %519 = vst.msk [vmem:[#allocation2 + $0x1] sm:$0x1] %vm428, %v509
    %520 = vst.msk [vmem:[#allocation2 + $0x9] sm:$0x1] %vm428, %v516
    %vm521 = vcmask 222384
    %v522 = vsel %vm521, %v390, -inf
    %523 = vmax.xlane.f32.xlu0 %v522
    %v524 = vpop.xlane.xlu0 %523
    %v525 = vsub.f32 %v390, %v524
    %v526 = vmul.f32 %v525, 1.442695
    %v527 = vpow.pop %v526
    %529 = vrot.lane.b32.xlu0 %v527, 106
    %v530 = vpop.permute.xlu0 %529
    %v532 = vsel %vm442, %v530, 0.0
    %533 = vadd.xlane.f32.xlu0 %v532
    %v534 = vpop.xlane.xlu0 %533
    %v535 = vrcp.pop %v534
    %v536 = vmul.f32 %v527, %v535
    %v539 = vunpack.c.l.s4 1966171168
    %v540 = vunpack.c.0.s8 %v539
    %v541 = vlaneseq
    %v542 = vshrl.u32 %v541, 7
    %v543 = vsub.s32 %v540, %v542
    %v544 = vrot.slane %v536, %v543
    %v545 = vcombine.high %v544, %v544
    %v547 = vunpack.c.l.s4 1966171168
    %v548 = vunpack.c.0.s8 %v547
    %v549 = vlaneseq
    %v550 = vshrl.u32 %v549, 7
    %v551 = vsub.s32 %v548, %v550
    %v552 = vrot.slane %v544, %v551
    %v554 = vunpack.c.l.s4 1966171168
    %v555 = vunpack.c.0.s8 %v554
    %v556 = vlaneseq
    %v557 = vshrl.u32 %v556, 7
    %v558 = vsub.s32 %v555, %v557
    %v559 = vrot.slane %v545, %v558
    %v560 = vlaneseq
    %v561 = vshrl.u32 %v560, 7
    %v562 = vsub.s32 0, %v561
    %v563 = vrot.slane %v552, %v562
    %v564 = vlaneseq
    %v565 = vshrl.u32 %v564, 7
    %v566 = vsub.s32 0, %v565
    %v567 = vrot.slane %v559, %v566
    %568 = vrot.lane.b32.xlu0 %v563, 106
    %v569 = vpop.permute.xlu0 %568
    %570 = vrot.lane.b32.xlu0 %v567, 106
    %v571 = vpop.permute.xlu0 %570
    %574 = vst.msk [vmem:[%s6 + $0x1] sm:$0x1] %vm485, %v569
    %575 = vst.msk [vmem:[%s6 + $0x9] sm:$0x1] %vm485, %v571
    %vm576 = vcmp.gt.s32.totalorder %v394, 2
    %577 = vrot.lane.b32.xlu0 %v401, 100
    %v578 = vpop.permute.xlu0 %577
    %v580 = vsel %vm576, %v578, 0.0
    %v583 = vunpack.c.l.s4 1966171168
    %v584 = vunpack.c.0.s8 %v583
    %v585 = vlaneseq
    %v586 = vshrl.u32 %v585, 7
    %v587 = vsub.s32 %v584, %v586
    %v588 = vrot.slane %v580, %v587
    %v589 = vcombine.high %v588, %v588
    %v591 = vunpack.c.l.s4 1966171168
    %v592 = vunpack.c.0.s8 %v591
    %v593 = vlaneseq
    %v594 = vshrl.u32 %v593, 7
    %v595 = vsub.s32 %v592, %v594
    %v596 = vrot.slane %v588, %v595
    %v598 = vunpack.c.l.s4 1966171168
    %v599 = vunpack.c.0.s8 %v598
    %v600 = vlaneseq
    %v601 = vshrl.u32 %v600, 7
    %v602 = vsub.s32 %v599, %v601
    %v603 = vrot.slane %v589, %v602
    %606 = vst.msk [vmem:[#allocation2 + $0x2] sm:$0x1] %vm428, %v596
    %607 = vst.msk [vmem:[#allocation2 + $0xa] sm:$0x1] %vm428, %v603
    %vm608 = vcmask 337184
    %v609 = vsel %vm608, %v390, -inf
    %610 = vmax.xlane.f32.xlu0 %v609
    %v611 = vpop.xlane.xlu0 %610
    %v612 = vsub.f32 %v390, %v611
    %v613 = vmul.f32 %v612, 1.442695
    %v614 = vpow.pop %v613
    %616 = vrot.lane.b32.xlu0 %v614, 92
    %v617 = vpop.permute.xlu0 %616
    %v619 = vsel %vm442, %v617, 0.0
    %620 = vadd.xlane.f32.xlu0 %v619
    %v621 = vpop.xlane.xlu0 %620
    %v622 = vrcp.pop %v621
    %v623 = vmul.f32 %v614, %v622
    %v626 = vunpack.c.l.s4 1966171168
    %v627 = vunpack.c.0.s8 %v626
    %v628 = vlaneseq
    %v629 = vshrl.u32 %v628, 7
    %v630 = vsub.s32 %v627, %v629
    %v631 = vrot.slane %v623, %v630
    %v632 = vcombine.high %v631, %v631
    %v634 = vunpack.c.l.s4 1966171168
    %v635 = vunpack.c.0.s8 %v634
    %v636 = vlaneseq
    %v637 = vshrl.u32 %v636, 7
    %v638 = vsub.s32 %v635, %v637
    %v639 = vrot.slane %v631, %v638
    %v641 = vunpack.c.l.s4 1966171168
    %v642 = vunpack.c.0.s8 %v641
    %v643 = vlaneseq
    %v644 = vshrl.u32 %v643, 7
    %v645 = vsub.s32 %v642, %v644
    %v646 = vrot.slane %v632, %v645
    %v647 = vlaneseq
    %v648 = vshrl.u32 %v647, 7
    %v649 = vsub.s32 0, %v648
    %v650 = vrot.slane %v639, %v649
    %v651 = vlaneseq
    %v652 = vshrl.u32 %v651, 7
    %v653 = vsub.s32 0, %v652
    %v654 = vrot.slane %v646, %v653
    %655 = vrot.lane.b32.xlu0 %v650, 92
    %v656 = vpop.permute.xlu0 %655
    %657 = vrot.lane.b32.xlu0 %v654, 92
    %v658 = vpop.permute.xlu0 %657
    %661 = vst.msk [vmem:[%s6 + $0x2] sm:$0x1] %vm485, %v656
    %662 = vst.msk [vmem:[%s6 + $0xa] sm:$0x1] %vm485, %v658
    %vm663 = vcmp.gt.s32.totalorder %v394, 3
    %664 = vrot.lane.b32.xlu0 %v401, 86
    %v665 = vpop.permute.xlu0 %664
    %v667 = vsel %vm663, %v665, 0.0
    %v670 = vunpack.c.l.s4 1966171168
    %v671 = vunpack.c.0.s8 %v670
    %v672 = vlaneseq
    %v673 = vshrl.u32 %v672, 7
    %v674 = vsub.s32 %v671, %v673
    %v675 = vrot.slane %v667, %v674
    %v676 = vcombine.high %v675, %v675
    %v678 = vunpack.c.l.s4 1966171168
    %v679 = vunpack.c.0.s8 %v678
    %v680 = vlaneseq
    %v681 = vshrl.u32 %v680, 7
    %v682 = vsub.s32 %v679, %v681
    %v683 = vrot.slane %v675, %v682
    %v685 = vunpack.c.l.s4 1966171168
    %v686 = vunpack.c.0.s8 %v685
    %v687 = vlaneseq
    %v688 = vshrl.u32 %v687, 7
    %v689 = vsub.s32 %v686, %v688
    %v690 = vrot.slane %v676, %v689
    %693 = vst.msk [vmem:[#allocation2 + $0x3] sm:$0x1] %vm428, %v683
    %694 = vst.msk [vmem:[#allocation2 + $0xb] sm:$0x1] %vm428, %v690
    %vm695 = vcmask 451984
    %v696 = vsel %vm695, %v390, -inf
    %697 = vmax.xlane.f32.xlu0 %v696
    %v698 = vpop.xlane.xlu0 %697
    %v699 = vsub.f32 %v390, %v698
    %v700 = vmul.f32 %v699, 1.442695
    %v701 = vpow.pop %v700
    %703 = vrot.lane.b32.xlu0 %v701, 78
    %v704 = vpop.permute.xlu0 %703
    %v706 = vsel %vm442, %v704, 0.0
    %707 = vadd.xlane.f32.xlu0 %v706
    %v708 = vpop.xlane.xlu0 %707
    %v709 = vrcp.pop %v708
    %v710 = vmul.f32 %v701, %v709
    %v713 = vunpack.c.l.s4 1966171168
    %v714 = vunpack.c.0.s8 %v713
    %v715 = vlaneseq
    %v716 = vshrl.u32 %v715, 7
    %v717 = vsub.s32 %v714, %v716
    %v718 = vrot.slane %v710, %v717
    %v719 = vcombine.high %v718, %v718
    %v721 = vunpack.c.l.s4 1966171168
    %v722 = vunpack.c.0.s8 %v721
    %v723 = vlaneseq
    %v724 = vshrl.u32 %v723, 7
    %v725 = vsub.s32 %v722, %v724
    %v726 = vrot.slane %v718, %v725
    %v728 = vunpack.c.l.s4 1966171168
    %v729 = vunpack.c.0.s8 %v728
    %v730 = vlaneseq
    %v731 = vshrl.u32 %v730, 7
    %v732 = vsub.s32 %v729, %v731
    %v733 = vrot.slane %v719, %v732
    %v734 = vlaneseq
    %v735 = vshrl.u32 %v734, 7
    %v736 = vsub.s32 0, %v735
    %v737 = vrot.slane %v726, %v736
    %v738 = vlaneseq
    %v739 = vshrl.u32 %v738, 7
    %v740 = vsub.s32 0, %v739
    %v741 = vrot.slane %v733, %v740
    %742 = vrot.lane.b32.xlu0 %v737, 78
    %v743 = vpop.permute.xlu0 %742
    %744 = vrot.lane.b32.xlu0 %v741, 78
    %v745 = vpop.permute.xlu0 %744
    %748 = vst.msk [vmem:[%s6 + $0x3] sm:$0x1] %vm485, %v743
    %749 = vst.msk [vmem:[%s6 + $0xb] sm:$0x1] %vm485, %v745
    %vm750 = vcmp.gt.s32.totalorder %v394, 4
    %751 = vrot.lane.b32.xlu0 %v401, 72
    %v752 = vpop.permute.xlu0 %751
    %v754 = vsel %vm750, %v752, 0.0
    %v757 = vunpack.c.l.s4 1966171168
    %v758 = vunpack.c.0.s8 %v757
    %v759 = vlaneseq
    %v760 = vshrl.u32 %v759, 7
    %v761 = vsub.s32 %v758, %v760
    %v762 = vrot.slane %v754, %v761
    %v763 = vcombine.high %v762, %v762
    %v765 = vunpack.c.l.s4 1966171168
    %v766 = vunpack.c.0.s8 %v765
    %v767 = vlaneseq
    %v768 = vshrl.u32 %v767, 7
    %v769 = vsub.s32 %v766, %v768
    %v770 = vrot.slane %v762, %v769
    %v772 = vunpack.c.l.s4 1966171168
    %v773 = vunpack.c.0.s8 %v772
    %v774 = vlaneseq
    %v775 = vshrl.u32 %v774, 7
    %v776 = vsub.s32 %v773, %v775
    %v777 = vrot.slane %v763, %v776
    %780 = vst.msk [vmem:[#allocation2 + $0x4] sm:$0x1] %vm428, %v770
    %781 = vst.msk [vmem:[#allocation2 + $0xc] sm:$0x1] %vm428, %v777
    %vm782 = vcmask 566784
    %v783 = vsel %vm782, %v390, -inf
    %784 = vmax.xlane.f32.xlu0 %v783
    %v785 = vpop.xlane.xlu0 %784
    %v786 = vsub.f32 %v390, %v785
    %v787 = vmul.f32 %v786, 1.442695
    %v788 = vpow.pop %v787
    %790 = vrot.lane.b32.xlu0 %v788, 64
    %v791 = vpop.permute.xlu0 %790
    %v793 = vsel %vm442, %v791, 0.0
    %794 = vadd.xlane.f32.xlu0 %v793
    %v795 = vpop.xlane.xlu0 %794
    %v796 = vrcp.pop %v795
    %v797 = vmul.f32 %v788, %v796
    %v800 = vunpack.c.l.s4 1966171168
    %v801 = vunpack.c.0.s8 %v800
    %v802 = vlaneseq
    %v803 = vshrl.u32 %v802, 7
    %v804 = vsub.s32 %v801, %v803
    %v805 = vrot.slane %v797, %v804
    %v806 = vcombine.high %v805, %v805
    %v808 = vunpack.c.l.s4 1966171168
    %v809 = vunpack.c.0.s8 %v808
    %v810 = vlaneseq
    %v811 = vshrl.u32 %v810, 7
    %v812 = vsub.s32 %v809, %v811
    %v813 = vrot.slane %v805, %v812
    %v815 = vunpack.c.l.s4 1966171168
    %v816 = vunpack.c.0.s8 %v815
    %v817 = vlaneseq
    %v818 = vshrl.u32 %v817, 7
    %v819 = vsub.s32 %v816, %v818
    %v820 = vrot.slane %v806, %v819
    %v821 = vlaneseq
    %v822 = vshrl.u32 %v821, 7
    %v823 = vsub.s32 0, %v822
    %v824 = vrot.slane %v813, %v823
    %v825 = vlaneseq
    %v826 = vshrl.u32 %v825, 7
    %v827 = vsub.s32 0, %v826
    %v828 = vrot.slane %v820, %v827
    %829 = vrot.lane.b32.xlu0 %v824, 64
    %v830 = vpop.permute.xlu0 %829
    %831 = vrot.lane.b32.xlu0 %v828, 64
    %v832 = vpop.permute.xlu0 %831
    %835 = vst.msk [vmem:[%s6 + $0x4] sm:$0x1] %vm485, %v830
    %836 = vst.msk [vmem:[%s6 + $0xc] sm:$0x1] %vm485, %v832
    %vm837 = vcmp.gt.s32.totalorder %v394, 5
    %838 = vrot.lane.b32.xlu0 %v401, 58
    %v839 = vpop.permute.xlu0 %838
    %v841 = vsel %vm837, %v839, 0.0
    %v844 = vunpack.c.l.s4 1966171168
    %v845 = vunpack.c.0.s8 %v844
    %v846 = vlaneseq
    %v847 = vshrl.u32 %v846, 7
    %v848 = vsub.s32 %v845, %v847
    %v849 = vrot.slane %v841, %v848
    %v850 = vcombine.high %v849, %v849
    %v852 = vunpack.c.l.s4 1966171168
    %v853 = vunpack.c.0.s8 %v852
    %v854 = vlaneseq
    %v855 = vshrl.u32 %v854, 7
    %v856 = vsub.s32 %v853, %v855
    %v857 = vrot.slane %v849, %v856
    %v859 = vunpack.c.l.s4 1966171168
    %v860 = vunpack.c.0.s8 %v859
    %v861 = vlaneseq
    %v862 = vshrl.u32 %v861, 7
    %v863 = vsub.s32 %v860, %v862
    %v864 = vrot.slane %v850, %v863
    %867 = vst.msk [vmem:[#allocation2 + $0x5] sm:$0x1] %vm428, %v857
    %868 = vst.msk [vmem:[#allocation2 + $0xd] sm:$0x1] %vm428, %v864
    %vm869 = vcmask 681584
    %v870 = vsel %vm869, %v390, -inf
    %871 = vmax.xlane.f32.xlu0 %v870
    %v872 = vpop.xlane.xlu0 %871
    %v873 = vsub.f32 %v390, %v872
    %v874 = vmul.f32 %v873, 1.442695
    %v875 = vpow.pop %v874
    %877 = vrot.lane.b32.xlu0 %v875, 50
    %v878 = vpop.permute.xlu0 %877
    %v880 = vsel %vm442, %v878, 0.0
    %881 = vadd.xlane.f32.xlu0 %v880
    %v882 = vpop.xlane.xlu0 %881
    %v883 = vrcp.pop %v882
    %v884 = vmul.f32 %v875, %v883
    %v887 = vunpack.c.l.s4 1966171168
    %v888 = vunpack.c.0.s8 %v887
    %v889 = vlaneseq
    %v890 = vshrl.u32 %v889, 7
    %v891 = vsub.s32 %v888, %v890
    %v892 = vrot.slane %v884, %v891
    %v893 = vcombine.high %v892, %v892
    %v895 = vunpack.c.l.s4 1966171168
    %v896 = vunpack.c.0.s8 %v895
    %v897 = vlaneseq
    %v898 = vshrl.u32 %v897, 7
    %v899 = vsub.s32 %v896, %v898
    %v900 = vrot.slane %v892, %v899
    %v902 = vunpack.c.l.s4 1966171168
    %v903 = vunpack.c.0.s8 %v902
    %v904 = vlaneseq
    %v905 = vshrl.u32 %v904, 7
    %v906 = vsub.s32 %v903, %v905
    %v907 = vrot.slane %v893, %v906
    %v908 = vlaneseq
    %v909 = vshrl.u32 %v908, 7
    %v910 = vsub.s32 0, %v909
    %v911 = vrot.slane %v900, %v910
    %v912 = vlaneseq
    %v913 = vshrl.u32 %v912, 7
    %v914 = vsub.s32 0, %v913
    %v915 = vrot.slane %v907, %v914
    %916 = vrot.lane.b32.xlu0 %v911, 50
    %v917 = vpop.permute.xlu0 %916
    %918 = vrot.lane.b32.xlu0 %v915, 50
    %v919 = vpop.permute.xlu0 %918
    %922 = vst.msk [vmem:[%s6 + $0x5] sm:$0x1] %vm485, %v917
    %923 = vst.msk [vmem:[%s6 + $0xd] sm:$0x1] %vm485, %v919
    %vm924 = vcmp.gt.s32.totalorder %v394, 6
    %925 = vrot.lane.b32.xlu0 %v401, 44
    %v926 = vpop.permute.xlu0 %925
    %v928 = vsel %vm924, %v926, 0.0
    %v931 = vunpack.c.l.s4 1966171168
    %v932 = vunpack.c.0.s8 %v931
    %v933 = vlaneseq
    %v934 = vshrl.u32 %v933, 7
    %v935 = vsub.s32 %v932, %v934
    %v936 = vrot.slane %v928, %v935
    %v937 = vcombine.high %v936, %v936
    %v939 = vunpack.c.l.s4 1966171168
    %v940 = vunpack.c.0.s8 %v939
    %v941 = vlaneseq
    %v942 = vshrl.u32 %v941, 7
    %v943 = vsub.s32 %v940, %v942
    %v944 = vrot.slane %v936, %v943
    %v946 = vunpack.c.l.s4 1966171168
    %v947 = vunpack.c.0.s8 %v946
    %v948 = vlaneseq
    %v949 = vshrl.u32 %v948, 7
    %v950 = vsub.s32 %v947, %v949
    %v951 = vrot.slane %v937, %v950
    %954 = vst.msk [vmem:[#allocation2 + $0x6] sm:$0x1] %vm428, %v944
    %955 = vst.msk [vmem:[#allocation2 + $0xe] sm:$0x1] %vm428, %v951
    %vm956 = vcmask 796384
    %v957 = vsel %vm956, %v390, -inf
    %958 = vmax.xlane.f32.xlu0 %v957
    %v959 = vpop.xlane.xlu0 %958
    %v960 = vsub.f32 %v390, %v959
    %v961 = vmul.f32 %v960, 1.442695
    %v962 = vpow.pop %v961
    %964 = vrot.lane.b32.xlu0 %v962, 36
    %v965 = vpop.permute.xlu0 %964
    %v967 = vsel %vm442, %v965, 0.0
    %968 = vadd.xlane.f32.xlu0 %v967
    %v969 = vpop.xlane.xlu0 %968
    %v970 = vrcp.pop %v969
    %v971 = vmul.f32 %v962, %v970
    %v974 = vunpack.c.l.s4 1966171168
    %v975 = vunpack.c.0.s8 %v974
    %v976 = vlaneseq
    %v977 = vshrl.u32 %v976, 7
    %v978 = vsub.s32 %v975, %v977
    %v979 = vrot.slane %v971, %v978
    %v980 = vcombine.high %v979, %v979
    %v982 = vunpack.c.l.s4 1966171168
    %v983 = vunpack.c.0.s8 %v982
    %v984 = vlaneseq
    %v985 = vshrl.u32 %v984, 7
    %v986 = vsub.s32 %v983, %v985
    %v987 = vrot.slane %v979, %v986
    %v989 = vunpack.c.l.s4 1966171168
    %v990 = vunpack.c.0.s8 %v989
    %v991 = vlaneseq
    %v992 = vshrl.u32 %v991, 7
    %v993 = vsub.s32 %v990, %v992
    %v994 = vrot.slane %v980, %v993
    %v995 = vlaneseq
    %v996 = vshrl.u32 %v995, 7
    %v997 = vsub.s32 0, %v996
    %v998 = vrot.slane %v987, %v997
    %v999 = vlaneseq
    %v1000 = vshrl.u32 %v999, 7
    %v1001 = vsub.s32 0, %v1000
    %v1002 = vrot.slane %v994, %v1001
    %1003 = vrot.lane.b32.xlu0 %v998, 36
    %v1004 = vpop.permute.xlu0 %1003
    %1005 = vrot.lane.b32.xlu0 %v1002, 36
    %v1006 = vpop.permute.xlu0 %1005
    %1009 = vst.msk [vmem:[%s6 + $0x6] sm:$0x1] %vm485, %v1004
    %1010 = vst.msk [vmem:[%s6 + $0xe] sm:$0x1] %vm485, %v1006
    %1011 = vst.msk [vmem:[#allocation2 + $0x7] sm:$0x1] %vm428, 0.0
    %1012 = vst.msk [vmem:[#allocation2 + $0xf] sm:$0x1] %vm428, 0.0
    %vm1013 = vcmp.eq.s32.totalorder %v394, 5
    %v1014 = vsel %vm1013, 1, 0
    %v1015 = vcvt.s32.f32 %v1014
    %v1018 = vunpack.c.l.s4 1966171168
    %v1019 = vunpack.c.0.s8 %v1018
    %v1020 = vlaneseq
    %v1021 = vshrl.u32 %v1020, 7
    %v1022 = vsub.s32 %v1019, %v1021
    %v1023 = vrot.slane %v1015, %v1022
    %v1024 = vcombine.high %v1023, %v1023
    %v1026 = vunpack.c.l.s4 1966171168
    %v1027 = vunpack.c.0.s8 %v1026
    %v1028 = vlaneseq
    %v1029 = vshrl.u32 %v1028, 7
    %v1030 = vsub.s32 %v1027, %v1029
    %v1031 = vrot.slane %v1023, %v1030
    %v1033 = vunpack.c.l.s4 1966171168
    %v1034 = vunpack.c.0.s8 %v1033
    %v1035 = vlaneseq
    %v1036 = vshrl.u32 %v1035, 7
    %v1037 = vsub.s32 %v1034, %v1036
    %v1038 = vrot.slane %v1024, %v1037
    %1041 = vst.msk [vmem:[%s6 + $0x7] sm:$0x1] %vm485, %v1031
    %1042 = vst.msk [vmem:[%s6 + $0xf] sm:$0x1] %vm485, %v1038
    // Predicated region
    $region22: #{invae_forward.1} parent=1 // pred_check
      _
    $region23: #{invae_forward.1} parent=1 // pred_check_branch
      %1044 = sbr.rel (0) target = $region25
    $region24: #{invae_forward.1} parent=1 // pred_region
      %s1046 = ssub.s32 256, 256
      %1047 = vsyncadd [#allocation3], %s1046
      %s1048 = sshll.u32 [#allocation2], 4
      %s1049 = int_to_ptr.vmem [resolvable:$true] %s1048
      %1054 = dma.vmem_to_hbm [thread:$0]  %s1049, 256, %s5, [#allocation3], 128, 128, 8
    $region25: #{invae_forward.1} parent=1 // pred_fallthru
      _
    // Predicated region
    $region26: #{invae_forward.1} parent=1 // pred_check
      _
    $region27: #{invae_forward.1} parent=1 // pred_check_branch
      %1056 = sbr.rel (0) target = $region29
    $region28: #{invae_forward.1} parent=1 // pred_region
      _
    $region29: #{invae_forward.1} parent=1 // pred_fallthru
      _
    // Predicated region
    $region30: #{invae_forward.1} parent=1 // pred_check
      _
    $region31: #{invae_forward.1} parent=1 // pred_check_branch
      %1058 = sbr.rel (0) target = $region33
    $region32: #{invae_forward.1} parent=1 // pred_region
      _
    $region33: #{invae_forward.1} parent=1 // pred_fallthru
      _
    // Predicated region
    $region34: #{invae_forward.1} parent=1 // pred_check
      _
    $region35: #{invae_forward.1} parent=1 // pred_check_branch
      %1060 = sbr.rel (0) target = $region37
    $region36: #{invae_forward.1} parent=1 // pred_region
      %1061 = dma.done [#allocation3], 256
    $region37: #{invae_forward.1} parent=1 // pred_fallthru
      _
    // Predicated region
    $region38: #{invae_forward.1} parent=1 // pred_check
      _
    $region39: #{invae_forward.1} parent=1 // pred_check_branch
      %1063 = sbr.rel (0) target = $region41
    $region40: #{invae_forward.1} parent=1 // pred_region
      _
    $region41: #{invae_forward.1} parent=1 // pred_fallthru
      _
    // Predicated region
    $region42: #{invae_forward.1} parent=1 // pred_check
      _
    $region43: #{invae_forward.1} parent=1 // pred_check_branch
      %1065 = sbr.rel (0) target = $region45
    $region44: #{invae_forward.1} parent=1 // pred_region
      _
    $region45: #{invae_forward.1} parent=1 // pred_fallthru
      _
    %1066 = vsyncpa [#allocation3], 1

</llo_original>
